<compile_context>
chip_gen: v5e
topology: v5e:2x2
jax: 0.10.0
libtpu: 0.0.40
codegen_flags: <defaults>
</compile_context>

<pallas_src>
import functools
import math

import jax
import jax.numpy as jnp
import numpy as np
from jax.experimental import pallas as pl
from jax.experimental.pallas import tpu as pltpu


# ----------------------------- Pallas kernel -------------------------------


def _gnn_fused_kernel(
    a_in_ref,        # (Bt, N, N)
    a_out_ref,       # (Bt, N, N)
    h_ref,           # (Bt, N, H)
    w_ein_t_ref,     # (H, H)    = linear_edge_in.weight.T
    b_ein_ref,       # (1, H)
    w_eout_t_ref,    # (H, H)    = linear_edge_out.weight.T
    b_eout_ref,      # (1, H)
    b_iah_ref,       # (1, H)
    b_oah_ref,       # (1, H)
    w_ih_in_t_ref,   # (3, H, H)  gate g: w_ih[gH:(g+1)H, :H].T
    w_ih_out_t_ref,  # (3, H, H)  gate g: w_ih[gH:(g+1)H, H:].T
    b_ih_ref,        # (3, 1, H)
    w_hh_t_ref,      # (3, H, H)  gate g: w_hh[gH:(g+1)H, :].T
    b_hh_ref,        # (3, 1, H)
    out_ref,         # (Bt, N, H)
    *,
    num_steps,
):
    Bt, N, H = h_ref.shape

    a_in = a_in_ref[...]       # (Bt, N, N)
    a_out = a_out_ref[...]     # (Bt, N, N)

    w_ein_t = w_ein_t_ref[...]
    w_eout_t = w_eout_t_ref[...]
    b_ein = b_ein_ref[...]
    b_eout = b_eout_ref[...]
    b_iah = b_iah_ref[...]
    b_oah = b_oah_ref[...]

    # Flattened (Bt*N, H) working tile for all batch-independent matmuls.
    h = h_ref[...].reshape(Bt * N, H)

    # step loop is short & static -> unrolled Python loop (full scheduler
    # visibility; weights / adjacency stay resident in VMEM across steps).
    for _ in range(num_steps):
        # Edge projections on the flattened tile (MXU sees Bt*N rows).
        edge_in = jnp.dot(h, w_ein_t, preferred_element_type=jnp.float32) + b_ein
        edge_out = jnp.dot(h, w_eout_t, preferred_element_type=jnp.float32) + b_eout

        # Per-graph adjacency propagation (batched matmul).
        input_in = (
            jnp.einsum(
                "bij,bjh->bih",
                a_in,
                edge_in.reshape(Bt, N, H),
                preferred_element_type=jnp.float32,
            ).reshape(Bt * N, H)
            + b_iah
        )
        input_out = (
            jnp.einsum(
                "bij,bjh->bih",
                a_out,
                edge_out.reshape(Bt, N, H),
                preferred_element_type=jnp.float32,
            ).reshape(Bt * N, H)
            + b_oah
        )
        # (dropout is identity in inference mode)

        # Gate-wise, lane-aligned matmuls: no (., 3H) lane slicing at
        # non-128-aligned offsets.
        def gate(g):
            i_g = (
                jnp.dot(input_in, w_ih_in_t_ref[g], preferred_element_type=jnp.float32)
                + jnp.dot(input_out, w_ih_out_t_ref[g], preferred_element_type=jnp.float32)
                + b_ih_ref[g]
            )
            h_g = (
                jnp.dot(h, w_hh_t_ref[g], preferred_element_type=jnp.float32)
                + b_hh_ref[g]
            )
            return i_g, h_g

        i_r, h_r = gate(0)
        i_i, h_i = gate(1)
        i_n, h_n = gate(2)

        resetgate = jax.nn.sigmoid(i_r + h_r)
        inputgate = jax.nn.sigmoid(i_i + h_i)
        newgate = jnp.tanh(i_n + resetgate * h_n)
        h = newgate + inputgate * (h - newgate)

    out_ref[...] = h.reshape(Bt, N, H).astype(out_ref.dtype)


# ------------------------------ JAX wrapper ---------------------------------


def _a_compat(A, N):
    """Replicates the module's pad/truncate to width 2N (plain-JAX glue)."""
    B = A.shape[0]
    expected = 2 * N
    if A.shape[2] < expected:
        pad = jnp.zeros((B, A.shape[1], expected - A.shape[2]), A.dtype)
        A = jnp.concatenate([A, pad], axis=2)
    elif A.shape[2] > expected:
        A = A[:, :, :expected]
    return A


def _pick_batch_block(B, N):
    """Largest divisor of B such that Bt*N stays near the MXU M dimension."""
    target = max(1, 256 // max(N, 1))
    best = 1
    for d in range(1, B + 1):
        if B % d == 0 and d <= target:
            best = d
    return best


def attention_gnn_forward(A, hidden, params, step=2, batch_block=None):
    B, N, H = hidden.shape
    A = _a_compat(A, N)
    a_in = A[:, :, :N]
    a_out = A[:, :, N : 2 * N]

    Bt = batch_block if batch_block is not None else _pick_batch_block(B, N)
    assert B % Bt == 0

    # Parameter plumbing (glue): pre-transpose, split per gate, biases as rows.
    w_ein_t = params["w_ein"].T                          # (H, H)
    w_eout_t = params["w_eout"].T                        # (H, H)
    w_ih_g = params["w_ih"].reshape(3, H, 2 * H)
    w_ih_in_t = jnp.transpose(w_ih_g[:, :, :H], (0, 2, 1))    # (3, H, H)
    w_ih_out_t = jnp.transpose(w_ih_g[:, :, H:], (0, 2, 1))   # (3, H, H)
    w_hh_t = jnp.transpose(params["w_hh"].reshape(3, H, H), (0, 2, 1))  # (3, H, H)
    b_ein = params["b_ein"].reshape(1, H)
    b_eout = params["b_eout"].reshape(1, H)
    b_iah = params["b_iah"].reshape(1, H)
    b_oah = params["b_oah"].reshape(1, H)
    b_ih = params["b_ih"].reshape(3, 1, H)
    b_hh = params["b_hh"].reshape(3, 1, H)

    def full(shape):
        return pl.BlockSpec(shape, lambda b: (0,) * len(shape))

    def per_batch(shape):
        return pl.BlockSpec(shape, lambda b: (b, 0, 0))

    # Explicit VMEM budget (double-buffered per-batch tiles + resident weights).
    f32b = 4
    block_bytes = f32b * (2 * Bt * N * N + 2 * Bt * N * H)
    weight_bytes = f32b * (11 * H * H + 12 * H)
    vmem_limit = int(
        min(64 * 1024 * 1024, max(8 * 1024 * 1024, 4 * (block_bytes + weight_bytes)))
    )

    kernel = functools.partial(_gnn_fused_kernel, num_steps=step)

    return pl.pallas_call(
        kernel,
        out_shape=jax.ShapeDtypeStruct((B, N, H), hidden.dtype),
        grid=(B // Bt,),
        in_specs=[
            per_batch((Bt, N, N)),     # a_in
            per_batch((Bt, N, N)),     # a_out
            per_batch((Bt, N, H)),     # hidden
            full((H, H)),              # w_ein_t
            full((1, H)),              # b_ein
            full((H, H)),              # w_eout_t
            full((1, H)),              # b_eout
            full((1, H)),              # b_iah
            full((1, H)),              # b_oah
            full((3, H, H)),           # w_ih_in_t
            full((3, H, H)),           # w_ih_out_t
            full((3, 1, H)),           # b_ih
            full((3, H, H)),           # w_hh_t
            full((3, 1, H)),           # b_hh
        ],
        out_specs=per_batch((Bt, N, H)),
        compiler_params=pltpu.CompilerParams(
            dimension_semantics=("parallel",),   # batch blocks are independent
            vmem_limit_bytes=vmem_limit,
        ),
    )(
        a_in, a_out, hidden,
        w_ein_t, b_ein, w_eout_t, b_eout, b_iah, b_oah,
        w_ih_in_t, w_ih_out_t, b_ih, w_hh_t, b_hh,
    )


# --------------------------- pure-JAX reference ------------------------------


def _gnn_cell_ref(A, hidden, p):
    B, N, H = hidden.shape
    A = _a_compat(A, N)
    a_in = A[:, :, :N]
    a_out = A[:, :, N : 2 * N]
    edge_in = hidden @ p["w_ein"].T + p["b_ein"]
    edge_out = hidden @ p["w_eout"].T + p["b_eout"]
    input_in = jnp.matmul(a_in, edge_in) + p["b_iah"]
    input_out = jnp.matmul(a_out, edge_out) + p["b_oah"]
    inputs = jnp.concatenate([input_in, input_out], axis=2)
    gi = inputs @ p["w_ih"].T + p["b_ih"]
    gh = hidden @ p["w_hh"].T + p["b_hh"]
    i_r, i_i, i_n = jnp.split(gi, 3, axis=2)
    h_r, h_i, h_n = jnp.split(gh, 3, axis=2)
    resetgate = jax.nn.sigmoid(i_r + h_r)
    inputgate = jax.nn.sigmoid(i_i + h_i)
    newgate = jnp.tanh(i_n + resetgate * h_n)
    return newgate + inputgate * (hidden - newgate)


def attention_gnn_reference(A, hidden, params, step=2):
    for _ in range(step):
        hidden = _gnn_cell_ref(A, hidden, params)
    return hidden


# ------------------------------- params init --------------------------------


def init_params(key, hidden_size):
    H = hidden_size
    stdv = 1.0 / math.sqrt(H)
    ks = jax.random.split(key, 10)

    def u(k, shape):
        return jax.random.uniform(k, shape, jnp.float32, minval=-stdv, maxval=stdv)

    return {
        "w_ih": u(ks[0], (3 * H, 2 * H)),
        "w_hh": u(ks[1], (3 * H, H)),
        "b_ih": u(ks[2], (3 * H,)),
        "b_hh": u(ks[3], (3 * H,)),
        "b_iah": u(ks[4], (H,)),
        "b_oah": u(ks[5], (H,)),
        "w_ein": u(ks[6], (H, H)),   # linear_edge_in.weight
        "b_ein": u(ks[7], (H,)),     # linear_edge_in.bias
        "w_eout": u(ks[8], (H, H)),  # linear_edge_out.weight
        "b_eout": u(ks[9], (H,)),    # linear_edge_out.bias
    }


# ---------------------------------- main -------------------------------------


if __name__ == "__main__":
    B, N, H = 2, 8, 32  # batch, nodes, hidden_size
    key = jax.random.PRNGKey(0)
    kp, ka, kh = jax.random.split(key, 3)

    params = init_params(kp, H)
    A = jax.random.uniform(ka, (B, N, 2 * N), jnp.float32)   # adjacency (in|out)
    hidden = jax.random.normal(kh, (B, N, H), jnp.float32)

    out = attention_gnn_forward(A, hidden, params, step=2)
    out = jax.block_until_ready(out)

    ref = attention_gnn_reference(A, hidden, params, step=2)
    np.testing.assert_allclose(np.asarray(out), np.asarray(ref), rtol=1e-5, atol=1e-5)

    print("KERNEL_OK")
</pallas_src>

<mosaic_0001>
module attributes {stable_mosaic.version = 11 : i64} {
  func.func @_gnn_fused_kernel(%arg0: i32, %arg1: memref<2x8x8xf32, #tpu.memory_space<vmem>>, %arg2: memref<2x8x8xf32, #tpu.memory_space<vmem>>, %arg3: memref<2x8x32xf32, #tpu.memory_space<vmem>>, %arg4: memref<32x32xf32, #tpu.memory_space<vmem>>, %arg5: memref<1x32xf32, #tpu.memory_space<vmem>>, %arg6: memref<32x32xf32, #tpu.memory_space<vmem>>, %arg7: memref<1x32xf32, #tpu.memory_space<vmem>>, %arg8: memref<1x32xf32, #tpu.memory_space<vmem>>, %arg9: memref<1x32xf32, #tpu.memory_space<vmem>>, %arg10: memref<3x32x32xf32, #tpu.memory_space<vmem>>, %arg11: memref<3x32x32xf32, #tpu.memory_space<vmem>>, %arg12: memref<3x1x32xf32, #tpu.memory_space<vmem>>, %arg13: memref<3x32x32xf32, #tpu.memory_space<vmem>>, %arg14: memref<3x1x32xf32, #tpu.memory_space<vmem>>, %arg15: memref<2x8x32xf32, #tpu.memory_space<vmem>>) attributes {dimension_semantics = [#tpu.dimension_semantics<parallel>], iteration_bounds = array<i64: 1>, scalar_prefetch = 0 : i64, scratch_operands = 0 : i64, tpu.core_type = #tpu.core_type<tc>, window_params = [{transform_indices = @transform_0, window_bounds = array<i64: 2, 8, 8>}, {transform_indices = @transform_1, window_bounds = array<i64: 2, 8, 8>}, {transform_indices = @transform_2, window_bounds = array<i64: 2, 8, 32>}, {pipeline_mode = #tpu.pipeline_mode<synchronous>, transform_indices = @transform_3, window_bounds = array<i64: 32, 32>}, {pipeline_mode = #tpu.pipeline_mode<synchronous>, transform_indices = @transform_4, window_bounds = array<i64: 1, 32>}, {pipeline_mode = #tpu.pipeline_mode<synchronous>, transform_indices = @transform_5, window_bounds = array<i64: 32, 32>}, {pipeline_mode = #tpu.pipeline_mode<synchronous>, transform_indices = @transform_6, window_bounds = array<i64: 1, 32>}, {pipeline_mode = #tpu.pipeline_mode<synchronous>, transform_indices = @transform_7, window_bounds = array<i64: 1, 32>}, {pipeline_mode = #tpu.pipeline_mode<synchronous>, transform_indices = @transform_8, window_bounds = array<i64: 1, 32>}, {pipeline_mode = #tpu.pipeline_mode<synchronous>, transform_indices = @transform_9, window_bounds = array<i64: 3, 32, 32>}, {pipeline_mode = #tpu.pipeline_mode<synchronous>, transform_indices = @transform_10, window_bounds = array<i64: 3, 32, 32>}, {pipeline_mode = #tpu.pipeline_mode<synchronous>, transform_indices = @transform_11, window_bounds = array<i64: 3, 1, 32>}, {pipeline_mode = #tpu.pipeline_mode<synchronous>, transform_indices = @transform_12, window_bounds = array<i64: 3, 32, 32>}, {pipeline_mode = #tpu.pipeline_mode<synchronous>, transform_indices = @transform_13, window_bounds = array<i64: 3, 1, 32>}, {transform_indices = @transform_14, window_bounds = array<i64: 2, 8, 32>}]} {
    %c0 = arith.constant 0 : index
    %c0_0 = arith.constant 0 : index
    %c0_1 = arith.constant 0 : index
    %0 = vector.load %arg1[%c0, %c0_0, %c0_1] : memref<2x8x8xf32, #tpu.memory_space<vmem>>, vector<2x8x8xf32>
    %c0_2 = arith.constant 0 : index
    %c0_3 = arith.constant 0 : index
    %c0_4 = arith.constant 0 : index
    %1 = vector.load %arg2[%c0_2, %c0_3, %c0_4] : memref<2x8x8xf32, #tpu.memory_space<vmem>>, vector<2x8x8xf32>
    %c0_5 = arith.constant 0 : index
    %c0_6 = arith.constant 0 : index
    %2 = vector.load %arg4[%c0_5, %c0_6] : memref<32x32xf32, #tpu.memory_space<vmem>>, vector<32x32xf32>
    %c0_7 = arith.constant 0 : index
    %c0_8 = arith.constant 0 : index
    %3 = vector.load %arg6[%c0_7, %c0_8] : memref<32x32xf32, #tpu.memory_space<vmem>>, vector<32x32xf32>
    %c0_9 = arith.constant 0 : index
    %c0_10 = arith.constant 0 : index
    %4 = vector.load %arg5[%c0_9, %c0_10] : memref<1x32xf32, #tpu.memory_space<vmem>>, vector<1x32xf32>
    %c0_11 = arith.constant 0 : index
    %c0_12 = arith.constant 0 : index
    %5 = vector.load %arg7[%c0_11, %c0_12] : memref<1x32xf32, #tpu.memory_space<vmem>>, vector<1x32xf32>
    %c0_13 = arith.constant 0 : index
    %c0_14 = arith.constant 0 : index
    %6 = vector.load %arg8[%c0_13, %c0_14] : memref<1x32xf32, #tpu.memory_space<vmem>>, vector<1x32xf32>
    %c0_15 = arith.constant 0 : index
    %c0_16 = arith.constant 0 : index
    %7 = vector.load %arg9[%c0_15, %c0_16] : memref<1x32xf32, #tpu.memory_space<vmem>>, vector<1x32xf32>
    %c0_17 = arith.constant 0 : index
    %c0_18 = arith.constant 0 : index
    %c0_19 = arith.constant 0 : index
    %8 = vector.load %arg3[%c0_17, %c0_18, %c0_19] : memref<2x8x32xf32, #tpu.memory_space<vmem>>, vector<2x8x32xf32>
    %9 = vector.shape_cast %8 : vector<2x8x32xf32> to vector<16x32xf32>
    %cst = arith.constant dense<0.000000e+00> : vector<16x32xf32>
    %10 = tpu.matmul %9, %2, %cst {dimension_numbers = #tpu.dot_dimension_numbers<[1], [0], [0], [1], [0, 0, 1, 1], [], []>} : vector<16x32xf32>, vector<32x32xf32>, vector<16x32xf32> -> vector<16x32xf32>
    %11 = vector.broadcast %4 : vector<1x32xf32> to vector<16x32xf32>
    %12 = arith.addf %10, %11 : vector<16x32xf32>
    %cst_20 = arith.constant dense<0.000000e+00> : vector<16x32xf32>
    %13 = tpu.matmul %9, %3, %cst_20 {dimension_numbers = #tpu.dot_dimension_numbers<[1], [0], [0], [1], [0, 0, 1, 1], [], []>} : vector<16x32xf32>, vector<32x32xf32>, vector<16x32xf32> -> vector<16x32xf32>
    %14 = vector.broadcast %5 : vector<1x32xf32> to vector<16x32xf32>
    %15 = arith.addf %13, %14 : vector<16x32xf32>
    %16 = vector.shape_cast %12 : vector<16x32xf32> to vector<2x8x32xf32>
    "tpu.trace_start"() <{level = 10 : i32, message = "bij,bjh->bih"}> : () -> ()
    %cst_21 = arith.constant dense<0.000000e+00> : vector<2x8x32xf32>
    %17 = tpu.matmul %0, %16, %cst_21 {dimension_numbers = #tpu.dot_dimension_numbers<[2], [1], [1], [2], [0, 0, 0, 1, 1, 2], [0], [0]>} : vector<2x8x8xf32>, vector<2x8x32xf32>, vector<2x8x32xf32> -> vector<2x8x32xf32>
    "tpu.trace_stop"() : () -> ()
    %18 = vector.shape_cast %17 : vector<2x8x32xf32> to vector<16x32xf32>
    %19 = vector.broadcast %6 : vector<1x32xf32> to vector<16x32xf32>
    %20 = arith.addf %18, %19 : vector<16x32xf32>
    %21 = vector.shape_cast %15 : vector<16x32xf32> to vector<2x8x32xf32>
    "tpu.trace_start"() <{level = 10 : i32, message = "bij,bjh->bih"}> : () -> ()
    %cst_22 = arith.constant dense<0.000000e+00> : vector<2x8x32xf32>
    %22 = tpu.matmul %1, %21, %cst_22 {dimension_numbers = #tpu.dot_dimension_numbers<[2], [1], [1], [2], [0, 0, 0, 1, 1, 2], [0], [0]>} : vector<2x8x8xf32>, vector<2x8x32xf32>, vector<2x8x32xf32> -> vector<2x8x32xf32>
    "tpu.trace_stop"() : () -> ()
    %23 = vector.shape_cast %22 : vector<2x8x32xf32> to vector<16x32xf32>
    %24 = vector.broadcast %7 : vector<1x32xf32> to vector<16x32xf32>
    %25 = arith.addf %23, %24 : vector<16x32xf32>
    %c0_23 = arith.constant 0 : index
    %c0_24 = arith.constant 0 : index
    %c0_25 = arith.constant 0 : index
    %26 = vector.load %arg10[%c0_23, %c0_24, %c0_25] : memref<3x32x32xf32, #tpu.memory_space<vmem>>, vector<1x32x32xf32>
    %27 = vector.shape_cast %26 : vector<1x32x32xf32> to vector<32x32xf32>
    %cst_26 = arith.constant dense<0.000000e+00> : vector<16x32xf32>
    %28 = tpu.matmul %20, %27, %cst_26 {dimension_numbers = #tpu.dot_dimension_numbers<[1], [0], [0], [1], [0, 0, 1, 1], [], []>} : vector<16x32xf32>, vector<32x32xf32>, vector<16x32xf32> -> vector<16x32xf32>
    %c0_27 = arith.constant 0 : index
    %c0_28 = arith.constant 0 : index
    %c0_29 = arith.constant 0 : index
    %29 = vector.load %arg11[%c0_27, %c0_28, %c0_29] : memref<3x32x32xf32, #tpu.memory_space<vmem>>, vector<1x32x32xf32>
    %30 = vector.shape_cast %29 : vector<1x32x32xf32> to vector<32x32xf32>
    %cst_30 = arith.constant dense<0.000000e+00> : vector<16x32xf32>
    %31 = tpu.matmul %25, %30, %cst_30 {dimension_numbers = #tpu.dot_dimension_numbers<[1], [0], [0], [1], [0, 0, 1, 1], [], []>} : vector<16x32xf32>, vector<32x32xf32>, vector<16x32xf32> -> vector<16x32xf32>
    %32 = arith.addf %28, %31 : vector<16x32xf32>
    %c0_31 = arith.constant 0 : index
    %c0_32 = arith.constant 0 : index
    %c0_33 = arith.constant 0 : index
    %33 = vector.load %arg12[%c0_31, %c0_32, %c0_33] : memref<3x1x32xf32, #tpu.memory_space<vmem>>, vector<1x1x32xf32>
    %34 = vector.shape_cast %33 : vector<1x1x32xf32> to vector<1x32xf32>
    %35 = vector.broadcast %34 : vector<1x32xf32> to vector<16x32xf32>
    %36 = arith.addf %32, %35 : vector<16x32xf32>
    %c0_34 = arith.constant 0 : index
    %c0_35 = arith.constant 0 : index
    %c0_36 = arith.constant 0 : index
    %37 = vector.load %arg13[%c0_34, %c0_35, %c0_36] : memref<3x32x32xf32, #tpu.memory_space<vmem>>, vector<1x32x32xf32>
    %38 = vector.shape_cast %37 : vector<1x32x32xf32> to vector<32x32xf32>
    %cst_37 = arith.constant dense<0.000000e+00> : vector<16x32xf32>
    %39 = tpu.matmul %9, %38, %cst_37 {dimension_numbers = #tpu.dot_dimension_numbers<[1], [0], [0], [1], [0, 0, 1, 1], [], []>} : vector<16x32xf32>, vector<32x32xf32>, vector<16x32xf32> -> vector<16x32xf32>
    %c0_38 = arith.constant 0 : index
    %c0_39 = arith.constant 0 : index
    %c0_40 = arith.constant 0 : index
    %40 = vector.load %arg14[%c0_38, %c0_39, %c0_40] : memref<3x1x32xf32, #tpu.memory_space<vmem>>, vector<1x1x32xf32>
    %41 = vector.shape_cast %40 : vector<1x1x32xf32> to vector<1x32xf32>
    %42 = vector.broadcast %41 : vector<1x32xf32> to vector<16x32xf32>
    %43 = arith.addf %39, %42 : vector<16x32xf32>
    %c1 = arith.constant 1 : index
    %c0_41 = arith.constant 0 : index
    %c0_42 = arith.constant 0 : index
    %44 = vector.load %arg10[%c1, %c0_41, %c0_42] : memref<3x32x32xf32, #tpu.memory_space<vmem>>, vector<1x32x32xf32>
    %45 = vector.shape_cast %44 : vector<1x32x32xf32> to vector<32x32xf32>
    %cst_43 = arith.constant dense<0.000000e+00> : vector<16x32xf32>
    %46 = tpu.matmul %20, %45, %cst_43 {dimension_numbers = #tpu.dot_dimension_numbers<[1], [0], [0], [1], [0, 0, 1, 1], [], []>} : vector<16x32xf32>, vector<32x32xf32>, vector<16x32xf32> -> vector<16x32xf32>
    %c1_44 = arith.constant 1 : index
    %c0_45 = arith.constant 0 : index
    %c0_46 = arith.constant 0 : index
    %47 = vector.load %arg11[%c1_44, %c0_45, %c0_46] : memref<3x32x32xf32, #tpu.memory_space<vmem>>, vector<1x32x32xf32>
    %48 = vector.shape_cast %47 : vector<1x32x32xf32> to vector<32x32xf32>
    %cst_47 = arith.constant dense<0.000000e+00> : vector<16x32xf32>
    %49 = tpu.matmul %25, %48, %cst_47 {dimension_numbers = #tpu.dot_dimension_numbers<[1], [0], [0], [1], [0, 0, 1, 1], [], []>} : vector<16x32xf32>, vector<32x32xf32>, vector<16x32xf32> -> vector<16x32xf32>
    %50 = arith.addf %46, %49 : vector<16x32xf32>
    %c1_48 = arith.constant 1 : index
    %c0_49 = arith.constant 0 : index
    %c0_50 = arith.constant 0 : index
    %51 = vector.load %arg12[%c1_48, %c0_49, %c0_50] : memref<3x1x32xf32, #tpu.memory_space<vmem>>, vector<1x1x32xf32>
    %52 = vector.shape_cast %51 : vector<1x1x32xf32> to vector<1x32xf32>
    %53 = vector.broadcast %52 : vector<1x32xf32> to vector<16x32xf32>
    %54 = arith.addf %50, %53 : vector<16x32xf32>
    %c1_51 = arith.constant 1 : index
    %c0_52 = arith.constant 0 : index
    %c0_53 = arith.constant 0 : index
    %55 = vector.load %arg13[%c1_51, %c0_52, %c0_53] : memref<3x32x32xf32, #tpu.memory_space<vmem>>, vector<1x32x32xf32>
    %56 = vector.shape_cast %55 : vector<1x32x32xf32> to vector<32x32xf32>
    %cst_54 = arith.constant dense<0.000000e+00> : vector<16x32xf32>
    %57 = tpu.matmul %9, %56, %cst_54 {dimension_numbers = #tpu.dot_dimension_numbers<[1], [0], [0], [1], [0, 0, 1, 1], [], []>} : vector<16x32xf32>, vector<32x32xf32>, vector<16x32xf32> -> vector<16x32xf32>
    %c1_55 = arith.constant 1 : index
    %c0_56 = arith.constant 0 : index
    %c0_57 = arith.constant 0 : index
    %58 = vector.load %arg14[%c1_55, %c0_56, %c0_57] : memref<3x1x32xf32, #tpu.memory_space<vmem>>, vector<1x1x32xf32>
    %59 = vector.shape_cast %58 : vector<1x1x32xf32> to vector<1x32xf32>
    %60 = vector.broadcast %59 : vector<1x32xf32> to vector<16x32xf32>
    %61 = arith.addf %57, %60 : vector<16x32xf32>
    %c2 = arith.constant 2 : index
    %c0_58 = arith.constant 0 : index
    %c0_59 = arith.constant 0 : index
    %62 = vector.load %arg10[%c2, %c0_58, %c0_59] : memref<3x32x32xf32, #tpu.memory_space<vmem>>, vector<1x32x32xf32>
    %63 = vector.shape_cast %62 : vector<1x32x32xf32> to vector<32x32xf32>
    %cst_60 = arith.constant dense<0.000000e+00> : vector<16x32xf32>
    %64 = tpu.matmul %20, %63, %cst_60 {dimension_numbers = #tpu.dot_dimension_numbers<[1], [0], [0], [1], [0, 0, 1, 1], [], []>} : vector<16x32xf32>, vector<32x32xf32>, vector<16x32xf32> -> vector<16x32xf32>
    %c2_61 = arith.constant 2 : index
    %c0_62 = arith.constant 0 : index
    %c0_63 = arith.constant 0 : index
    %65 = vector.load %arg11[%c2_61, %c0_62, %c0_63] : memref<3x32x32xf32, #tpu.memory_space<vmem>>, vector<1x32x32xf32>
    %66 = vector.shape_cast %65 : vector<1x32x32xf32> to vector<32x32xf32>
    %cst_64 = arith.constant dense<0.000000e+00> : vector<16x32xf32>
    %67 = tpu.matmul %25, %66, %cst_64 {dimension_numbers = #tpu.dot_dimension_numbers<[1], [0], [0], [1], [0, 0, 1, 1], [], []>} : vector<16x32xf32>, vector<32x32xf32>, vector<16x32xf32> -> vector<16x32xf32>
    %68 = arith.addf %64, %67 : vector<16x32xf32>
    %c2_65 = arith.constant 2 : index
    %c0_66 = arith.constant 0 : index
    %c0_67 = arith.constant 0 : index
    %69 = vector.load %arg12[%c2_65, %c0_66, %c0_67] : memref<3x1x32xf32, #tpu.memory_space<vmem>>, vector<1x1x32xf32>
    %70 = vector.shape_cast %69 : vector<1x1x32xf32> to vector<1x32xf32>
    %71 = vector.broadcast %70 : vector<1x32xf32> to vector<16x32xf32>
    %72 = arith.addf %68, %71 : vector<16x32xf32>
    %c2_68 = arith.constant 2 : index
    %c0_69 = arith.constant 0 : index
    %c0_70 = arith.constant 0 : index
    %73 = vector.load %arg13[%c2_68, %c0_69, %c0_70] : memref<3x32x32xf32, #tpu.memory_space<vmem>>, vector<1x32x32xf32>
    %74 = vector.shape_cast %73 : vector<1x32x32xf32> to vector<32x32xf32>
    %cst_71 = arith.constant dense<0.000000e+00> : vector<16x32xf32>
    %75 = tpu.matmul %9, %74, %cst_71 {dimension_numbers = #tpu.dot_dimension_numbers<[1], [0], [0], [1], [0, 0, 1, 1], [], []>} : vector<16x32xf32>, vector<32x32xf32>, vector<16x32xf32> -> vector<16x32xf32>
    %c2_72 = arith.constant 2 : index
    %c0_73 = arith.constant 0 : index
    %c0_74 = arith.constant 0 : index
    %76 = vector.load %arg14[%c2_72, %c0_73, %c0_74] : memref<3x1x32xf32, #tpu.memory_space<vmem>>, vector<1x1x32xf32>
    %77 = vector.shape_cast %76 : vector<1x1x32xf32> to vector<1x32xf32>
    %78 = vector.broadcast %77 : vector<1x32xf32> to vector<16x32xf32>
    %79 = arith.addf %75, %78 : vector<16x32xf32>
    %80 = arith.addf %36, %43 : vector<16x32xf32>
    %81 = arith.negf %80 : vector<16x32xf32>
    %82 = math.exp %81 : vector<16x32xf32>
    %cst_75 = arith.constant 1.000000e+00 : f32
    %83 = vector.broadcast %cst_75 : f32 to vector<16x32xf32>
    %84 = arith.addf %83, %82 : vector<16x32xf32>
    %85 = arith.divf %83, %84 : vector<16x32xf32>
    %86 = arith.addf %54, %61 : vector<16x32xf32>
    %87 = arith.negf %86 : vector<16x32xf32>
    %88 = math.exp %87 : vector<16x32xf32>
    %cst_76 = arith.constant 1.000000e+00 : f32
    %89 = vector.broadcast %cst_76 : f32 to vector<16x32xf32>
    %90 = arith.addf %89, %88 : vector<16x32xf32>
    %91 = arith.divf %89, %90 : vector<16x32xf32>
    %92 = arith.mulf %85, %79 : vector<16x32xf32>
    %93 = arith.addf %72, %92 : vector<16x32xf32>
    %94 = math.tanh %93 : vector<16x32xf32>
    %95 = arith.subf %9, %94 : vector<16x32xf32>
    %96 = arith.mulf %91, %95 : vector<16x32xf32>
    %97 = arith.addf %94, %96 : vector<16x32xf32>
    %cst_77 = arith.constant dense<0.000000e+00> : vector<16x32xf32>
    %98 = tpu.matmul %97, %2, %cst_77 {dimension_numbers = #tpu.dot_dimension_numbers<[1], [0], [0], [1], [0, 0, 1, 1], [], []>} : vector<16x32xf32>, vector<32x32xf32>, vector<16x32xf32> -> vector<16x32xf32>
    %99 = vector.broadcast %4 : vector<1x32xf32> to vector<16x32xf32>
    %100 = arith.addf %98, %99 : vector<16x32xf32>
    %cst_78 = arith.constant dense<0.000000e+00> : vector<16x32xf32>
    %101 = tpu.matmul %97, %3, %cst_78 {dimension_numbers = #tpu.dot_dimension_numbers<[1], [0], [0], [1], [0, 0, 1, 1], [], []>} : vector<16x32xf32>, vector<32x32xf32>, vector<16x32xf32> -> vector<16x32xf32>
    %102 = vector.broadcast %5 : vector<1x32xf32> to vector<16x32xf32>
    %103 = arith.addf %101, %102 : vector<16x32xf32>
    %104 = vector.shape_cast %100 : vector<16x32xf32> to vector<2x8x32xf32>
    "tpu.trace_start"() <{level = 10 : i32, message = "bij,bjh->bih"}> : () -> ()
    %cst_79 = arith.constant dense<0.000000e+00> : vector<2x8x32xf32>
    %105 = tpu.matmul %0, %104, %cst_79 {dimension_numbers = #tpu.dot_dimension_numbers<[2], [1], [1], [2], [0, 0, 0, 1, 1, 2], [0], [0]>} : vector<2x8x8xf32>, vector<2x8x32xf32>, vector<2x8x32xf32> -> vector<2x8x32xf32>
    "tpu.trace_stop"() : () -> ()
    %106 = vector.shape_cast %105 : vector<2x8x32xf32> to vector<16x32xf32>
    %107 = vector.broadcast %6 : vector<1x32xf32> to vector<16x32xf32>
    %108 = arith.addf %106, %107 : vector<16x32xf32>
    %109 = vector.shape_cast %103 : vector<16x32xf32> to vector<2x8x32xf32>
    "tpu.trace_start"() <{level = 10 : i32, message = "bij,bjh->bih"}> : () -> ()
    %cst_80 = arith.constant dense<0.000000e+00> : vector<2x8x32xf32>
    %110 = tpu.matmul %1, %109, %cst_80 {dimension_numbers = #tpu.dot_dimension_numbers<[2], [1], [1], [2], [0, 0, 0, 1, 1, 2], [0], [0]>} : vector<2x8x8xf32>, vector<2x8x32xf32>, vector<2x8x32xf32> -> vector<2x8x32xf32>
    "tpu.trace_stop"() : () -> ()
    %111 = vector.shape_cast %110 : vector<2x8x32xf32> to vector<16x32xf32>
    %112 = vector.broadcast %7 : vector<1x32xf32> to vector<16x32xf32>
    %113 = arith.addf %111, %112 : vector<16x32xf32>
    %c0_81 = arith.constant 0 : index
    %c0_82 = arith.constant 0 : index
    %c0_83 = arith.constant 0 : index
    %114 = vector.load %arg10[%c0_81, %c0_82, %c0_83] : memref<3x32x32xf32, #tpu.memory_space<vmem>>, vector<1x32x32xf32>
    %115 = vector.shape_cast %114 : vector<1x32x32xf32> to vector<32x32xf32>
    %cst_84 = arith.constant dense<0.000000e+00> : vector<16x32xf32>
    %116 = tpu.matmul %108, %115, %cst_84 {dimension_numbers = #tpu.dot_dimension_numbers<[1], [0], [0], [1], [0, 0, 1, 1], [], []>} : vector<16x32xf32>, vector<32x32xf32>, vector<16x32xf32> -> vector<16x32xf32>
    %c0_85 = arith.constant 0 : index
    %c0_86 = arith.constant 0 : index
    %c0_87 = arith.constant 0 : index
    %117 = vector.load %arg11[%c0_85, %c0_86, %c0_87] : memref<3x32x32xf32, #tpu.memory_space<vmem>>, vector<1x32x32xf32>
    %118 = vector.shape_cast %117 : vector<1x32x32xf32> to vector<32x32xf32>
    %cst_88 = arith.constant dense<0.000000e+00> : vector<16x32xf32>
    %119 = tpu.matmul %113, %118, %cst_88 {dimension_numbers = #tpu.dot_dimension_numbers<[1], [0], [0], [1], [0, 0, 1, 1], [], []>} : vector<16x32xf32>, vector<32x32xf32>, vector<16x32xf32> -> vector<16x32xf32>
    %120 = arith.addf %116, %119 : vector<16x32xf32>
    %c0_89 = arith.constant 0 : index
    %c0_90 = arith.constant 0 : index
    %c0_91 = arith.constant 0 : index
    %121 = vector.load %arg12[%c0_89, %c0_90, %c0_91] : memref<3x1x32xf32, #tpu.memory_space<vmem>>, vector<1x1x32xf32>
    %122 = vector.shape_cast %121 : vector<1x1x32xf32> to vector<1x32xf32>
    %123 = vector.broadcast %122 : vector<1x32xf32> to vector<16x32xf32>
    %124 = arith.addf %120, %123 : vector<16x32xf32>
    %c0_92 = arith.constant 0 : index
    %c0_93 = arith.constant 0 : index
    %c0_94 = arith.constant 0 : index
    %125 = vector.load %arg13[%c0_92, %c0_93, %c0_94] : memref<3x32x32xf32, #tpu.memory_space<vmem>>, vector<1x32x32xf32>
    %126 = vector.shape_cast %125 : vector<1x32x32xf32> to vector<32x32xf32>
    %cst_95 = arith.constant dense<0.000000e+00> : vector<16x32xf32>
    %127 = tpu.matmul %97, %126, %cst_95 {dimension_numbers = #tpu.dot_dimension_numbers<[1], [0], [0], [1], [0, 0, 1, 1], [], []>} : vector<16x32xf32>, vector<32x32xf32>, vector<16x32xf32> -> vector<16x32xf32>
    %c0_96 = arith.constant 0 : index
    %c0_97 = arith.constant 0 : index
    %c0_98 = arith.constant 0 : index
    %128 = vector.load %arg14[%c0_96, %c0_97, %c0_98] : memref<3x1x32xf32, #tpu.memory_space<vmem>>, vector<1x1x32xf32>
    %129 = vector.shape_cast %128 : vector<1x1x32xf32> to vector<1x32xf32>
    %130 = vector.broadcast %129 : vector<1x32xf32> to vector<16x32xf32>
    %131 = arith.addf %127, %130 : vector<16x32xf32>
    %c1_99 = arith.constant 1 : index
    %c0_100 = arith.constant 0 : index
    %c0_101 = arith.constant 0 : index
    %132 = vector.load %arg10[%c1_99, %c0_100, %c0_101] : memref<3x32x32xf32, #tpu.memory_space<vmem>>, vector<1x32x32xf32>
    %133 = vector.shape_cast %132 : vector<1x32x32xf32> to vector<32x32xf32>
    %cst_102 = arith.constant dense<0.000000e+00> : vector<16x32xf32>
    %134 = tpu.matmul %108, %133, %cst_102 {dimension_numbers = #tpu.dot_dimension_numbers<[1], [0], [0], [1], [0, 0, 1, 1], [], []>} : vector<16x32xf32>, vector<32x32xf32>, vector<16x32xf32> -> vector<16x32xf32>
    %c1_103 = arith.constant 1 : index
    %c0_104 = arith.constant 0 : index
    %c0_105 = arith.constant 0 : index
    %135 = vector.load %arg11[%c1_103, %c0_104, %c0_105] : memref<3x32x32xf32, #tpu.memory_space<vmem>>, vector<1x32x32xf32>
    %136 = vector.shape_cast %135 : vector<1x32x32xf32> to vector<32x32xf32>
    %cst_106 = arith.constant dense<0.000000e+00> : vector<16x32xf32>
    %137 = tpu.matmul %113, %136, %cst_106 {dimension_numbers = #tpu.dot_dimension_numbers<[1], [0], [0], [1], [0, 0, 1, 1], [], []>} : vector<16x32xf32>, vector<32x32xf32>, vector<16x32xf32> -> vector<16x32xf32>
    %138 = arith.addf %134, %137 : vector<16x32xf32>
    %c1_107 = arith.constant 1 : index
    %c0_108 = arith.constant 0 : index
    %c0_109 = arith.constant 0 : index
    %139 = vector.load %arg12[%c1_107, %c0_108, %c0_109] : memref<3x1x32xf32, #tpu.memory_space<vmem>>, vector<1x1x32xf32>
    %140 = vector.shape_cast %139 : vector<1x1x32xf32> to vector<1x32xf32>
    %141 = vector.broadcast %140 : vector<1x32xf32> to vector<16x32xf32>
    %142 = arith.addf %138, %141 : vector<16x32xf32>
    %c1_110 = arith.constant 1 : index
    %c0_111 = arith.constant 0 : index
    %c0_112 = arith.constant 0 : index
    %143 = vector.load %arg13[%c1_110, %c0_111, %c0_112] : memref<3x32x32xf32, #tpu.memory_space<vmem>>, vector<1x32x32xf32>
    %144 = vector.shape_cast %143 : vector<1x32x32xf32> to vector<32x32xf32>
    %cst_113 = arith.constant dense<0.000000e+00> : vector<16x32xf32>
    %145 = tpu.matmul %97, %144, %cst_113 {dimension_numbers = #tpu.dot_dimension_numbers<[1], [0], [0], [1], [0, 0, 1, 1], [], []>} : vector<16x32xf32>, vector<32x32xf32>, vector<16x32xf32> -> vector<16x32xf32>
    %c1_114 = arith.constant 1 : index
    %c0_115 = arith.constant 0 : index
    %c0_116 = arith.constant 0 : index
    %146 = vector.load %arg14[%c1_114, %c0_115, %c0_116] : memref<3x1x32xf32, #tpu.memory_space<vmem>>, vector<1x1x32xf32>
    %147 = vector.shape_cast %146 : vector<1x1x32xf32> to vector<1x32xf32>
    %148 = vector.broadcast %147 : vector<1x32xf32> to vector<16x32xf32>
    %149 = arith.addf %145, %148 : vector<16x32xf32>
    %c2_117 = arith.constant 2 : index
    %c0_118 = arith.constant 0 : index
    %c0_119 = arith.constant 0 : index
    %150 = vector.load %arg10[%c2_117, %c0_118, %c0_119] : memref<3x32x32xf32, #tpu.memory_space<vmem>>, vector<1x32x32xf32>
    %151 = vector.shape_cast %150 : vector<1x32x32xf32> to vector<32x32xf32>
    %cst_120 = arith.constant dense<0.000000e+00> : vector<16x32xf32>
    %152 = tpu.matmul %108, %151, %cst_120 {dimension_numbers = #tpu.dot_dimension_numbers<[1], [0], [0], [1], [0, 0, 1, 1], [], []>} : vector<16x32xf32>, vector<32x32xf32>, vector<16x32xf32> -> vector<16x32xf32>
    %c2_121 = arith.constant 2 : index
    %c0_122 = arith.constant 0 : index
    %c0_123 = arith.constant 0 : index
    %153 = vector.load %arg11[%c2_121, %c0_122, %c0_123] : memref<3x32x32xf32, #tpu.memory_space<vmem>>, vector<1x32x32xf32>
    %154 = vector.shape_cast %153 : vector<1x32x32xf32> to vector<32x32xf32>
    %cst_124 = arith.constant dense<0.000000e+00> : vector<16x32xf32>
    %155 = tpu.matmul %113, %154, %cst_124 {dimension_numbers = #tpu.dot_dimension_numbers<[1], [0], [0], [1], [0, 0, 1, 1], [], []>} : vector<16x32xf32>, vector<32x32xf32>, vector<16x32xf32> -> vector<16x32xf32>
    %156 = arith.addf %152, %155 : vector<16x32xf32>
    %c2_125 = arith.constant 2 : index
    %c0_126 = arith.constant 0 : index
    %c0_127 = arith.constant 0 : index
    %157 = vector.load %arg12[%c2_125, %c0_126, %c0_127] : memref<3x1x32xf32, #tpu.memory_space<vmem>>, vector<1x1x32xf32>
    %158 = vector.shape_cast %157 : vector<1x1x32xf32> to vector<1x32xf32>
    %159 = vector.broadcast %158 : vector<1x32xf32> to vector<16x32xf32>
    %160 = arith.addf %156, %159 : vector<16x32xf32>
    %c2_128 = arith.constant 2 : index
    %c0_129 = arith.constant 0 : index
    %c0_130 = arith.constant 0 : index
    %161 = vector.load %arg13[%c2_128, %c0_129, %c0_130] : memref<3x32x32xf32, #tpu.memory_space<vmem>>, vector<1x32x32xf32>
    %162 = vector.shape_cast %161 : vector<1x32x32xf32> to vector<32x32xf32>
    %cst_131 = arith.constant dense<0.000000e+00> : vector<16x32xf32>
    %163 = tpu.matmul %97, %162, %cst_131 {dimension_numbers = #tpu.dot_dimension_numbers<[1], [0], [0], [1], [0, 0, 1, 1], [], []>} : vector<16x32xf32>, vector<32x32xf32>, vector<16x32xf32> -> vector<16x32xf32>
    %c2_132 = arith.constant 2 : index
    %c0_133 = arith.constant 0 : index
    %c0_134 = arith.constant 0 : index
    %164 = vector.load %arg14[%c2_132, %c0_133, %c0_134] : memref<3x1x32xf32, #tpu.memory_space<vmem>>, vector<1x1x32xf32>
    %165 = vector.shape_cast %164 : vector<1x1x32xf32> to vector<1x32xf32>
    %166 = vector.broadcast %165 : vector<1x32xf32> to vector<16x32xf32>
    %167 = arith.addf %163, %166 : vector<16x32xf32>
    %168 = arith.addf %124, %131 : vector<16x32xf32>
    %169 = arith.negf %168 : vector<16x32xf32>
    %170 = math.exp %169 : vector<16x32xf32>
    %cst_135 = arith.constant 1.000000e+00 : f32
    %171 = vector.broadcast %cst_135 : f32 to vector<16x32xf32>
    %172 = arith.addf %171, %170 : vector<16x32xf32>
    %173 = arith.divf %171, %172 : vector<16x32xf32>
    %174 = arith.addf %142, %149 : vector<16x32xf32>
    %175 = arith.negf %174 : vector<16x32xf32>
    %176 = math.exp %175 : vector<16x32xf32>
    %cst_136 = arith.constant 1.000000e+00 : f32
    %177 = vector.broadcast %cst_136 : f32 to vector<16x32xf32>
    %178 = arith.addf %177, %176 : vector<16x32xf32>
    %179 = arith.divf %177, %178 : vector<16x32xf32>
    %180 = arith.mulf %173, %167 : vector<16x32xf32>
    %181 = arith.addf %160, %180 : vector<16x32xf32>
    %182 = math.tanh %181 : vector<16x32xf32>
    %183 = arith.subf %97, %182 : vector<16x32xf32>
    %184 = arith.mulf %179, %183 : vector<16x32xf32>
    %185 = arith.addf %182, %184 : vector<16x32xf32>
    %186 = vector.shape_cast %185 : vector<16x32xf32> to vector<2x8x32xf32>
    %c0_137 = arith.constant 0 : index
    %c0_138 = arith.constant 0 : index
    %c0_139 = arith.constant 0 : index
    %187 = vector.load %arg15[%c0_137, %c0_138, %c0_139] : memref<2x8x32xf32, #tpu.memory_space<vmem>>, vector<2x8x32xf32>
    tpu.vector_store %arg15[%c0_137, %c0_138, %c0_139], %186 {strides = array<i32>} : memref<2x8x32xf32, #tpu.memory_space<vmem>>, vector<2x8x32xf32>,
    return
  }
  func.func @transform_0(%arg0: i32) -> (i32, i32, i32) {
    %c0_i32 = arith.constant 0 : i32
    %c0_i32_0 = arith.constant 0 : i32
    %c0_i32_1 = arith.constant 0 : i32
    return %arg0, %c0_i32, %c0_i32_0 : i32, i32, i32
  }
  func.func @transform_1(%arg0: i32) -> (i32, i32, i32) {
    %c0_i32 = arith.constant 0 : i32
    %c0_i32_0 = arith.constant 0 : i32
    %c0_i32_1 = arith.constant 0 : i32
    return %arg0, %c0_i32, %c0_i32_0 : i32, i32, i32
  }
  func.func @transform_2(%arg0: i32) -> (i32, i32, i32) {
    %c0_i32 = arith.constant 0 : i32
    %c0_i32_0 = arith.constant 0 : i32
    %c0_i32_1 = arith.constant 0 : i32
    return %arg0, %c0_i32, %c0_i32_0 : i32, i32, i32
  }
  func.func @transform_3(%arg0: i32) -> (i32, i32) {
    %c0_i32 = arith.constant 0 : i32
    %c0_i32_0 = arith.constant 0 : i32
    %c0_i32_1 = arith.constant 0 : i32
    return %c0_i32, %c0_i32_0 : i32, i32
  }
  func.func @transform_4(%arg0: i32) -> (i32, i32) {
    %c0_i32 = arith.constant 0 : i32
    %c0_i32_0 = arith.constant 0 : i32
    %c0_i32_1 = arith.constant 0 : i32
    return %c0_i32, %c0_i32_0 : i32, i32
  }
  func.func @transform_5(%arg0: i32) -> (i32, i32) {
    %c0_i32 = arith.constant 0 : i32
    %c0_i32_0 = arith.constant 0 : i32
    %c0_i32_1 = arith.constant 0 : i32
    return %c0_i32, %c0_i32_0 : i32, i32
  }
  func.func @transform_6(%arg0: i32) -> (i32, i32) {
    %c0_i32 = arith.constant 0 : i32
    %c0_i32_0 = arith.constant 0 : i32
    %c0_i32_1 = arith.constant 0 : i32
    return %c0_i32, %c0_i32_0 : i32, i32
  }
  func.func @transform_7(%arg0: i32) -> (i32, i32) {
    %c0_i32 = arith.constant 0 : i32
    %c0_i32_0 = arith.constant 0 : i32
    %c0_i32_1 = arith.constant 0 : i32
    return %c0_i32, %c0_i32_0 : i32, i32
  }
  func.func @transform_8(%arg0: i32) -> (i32, i32) {
    %c0_i32 = arith.constant 0 : i32
    %c0_i32_0 = arith.constant 0 : i32
    %c0_i32_1 = arith.constant 0 : i32
    return %c0_i32, %c0_i32_0 : i32, i32
  }
  func.func @transform_9(%arg0: i32) -> (i32, i32, i32) {
    %c0_i32 = arith.constant 0 : i32
    %c0_i32_0 = arith.constant 0 : i32
    %c0_i32_1 = arith.constant 0 : i32
    %c0_i32_2 = arith.constant 0 : i32
    return %c0_i32, %c0_i32_0, %c0_i32_1 : i32, i32, i32
  }
  func.func @transform_10(%arg0: i32) -> (i32, i32, i32) {
    %c0_i32 = arith.constant 0 : i32
    %c0_i32_0 = arith.constant 0 : i32
    %c0_i32_1 = arith.constant 0 : i32
    %c0_i32_2 = arith.constant 0 : i32
    return %c0_i32, %c0_i32_0, %c0_i32_1 : i32, i32, i32
  }
  func.func @transform_11(%arg0: i32) -> (i32, i32, i32) {
    %c0_i32 = arith.constant 0 : i32
    %c0_i32_0 = arith.constant 0 : i32
    %c0_i32_1 = arith.constant 0 : i32
    %c0_i32_2 = arith.constant 0 : i32
    return %c0_i32, %c0_i32_0, %c0_i32_1 : i32, i32, i32
  }
  func.func @transform_12(%arg0: i32) -> (i32, i32, i32) {
    %c0_i32 = arith.constant 0 : i32
    %c0_i32_0 = arith.constant 0 : i32
    %c0_i32_1 = arith.constant 0 : i32
    %c0_i32_2 = arith.constant 0 : i32
    return %c0_i32, %c0_i32_0, %c0_i32_1 : i32, i32, i32
  }
  func.func @transform_13(%arg0: i32) -> (i32, i32, i32) {
    %c0_i32 = arith.constant 0 : i32
    %c0_i32_0 = arith.constant 0 : i32
    %c0_i32_1 = arith.constant 0 : i32
    %c0_i32_2 = arith.constant 0 : i32
    return %c0_i32, %c0_i32_0, %c0_i32_1 : i32, i32, i32
  }
  func.func @transform_14(%arg0: i32) -> (i32, i32, i32) {
    %c0_i32 = arith.constant 0 : i32
    %c0_i32_0 = arith.constant 0 : i32
    %c0_i32_1 = arith.constant 0 : i32
    return %arg0, %c0_i32, %c0_i32_0 : i32, i32, i32
  }
}

</mosaic_0001>

<llo_original>
// kernel: tpu_custom_call.1
$region0: #{tpu_custom_call.1}
  #allocation0 [shape = 'u32[]', space=smem, size = 0x4, offset = 0x4, fixed_abs, tag = 'smem constant byte address 0x4 - core index']
  #allocation1 [shape = 'u32[72,128]{1,0:T(1,128)}', space=vmem, size = 0x9000, scoped, tag = 'internal scratch']
  %s0 = inlined_call_operand.hbm [shape: f32[2,8,8], index: 0, kind: input, shape index: {}]
  %s1 = inlined_call_operand.hbm [shape: f32[2,8,8], index: 1, kind: input, shape index: {}]
  %s2 = inlined_call_operand.hbm [shape: f32[2,8,32], index: 2, kind: input, shape index: {}]
  %s3 = inlined_call_operand.hbm [shape: f32[32,32], index: 3, kind: input, shape index: {}]
  %s4 = inlined_call_operand.hbm [shape: f32[1,32], index: 4, kind: input, shape index: {}]
  %s5 = inlined_call_operand.hbm [shape: f32[32,32], index: 5, kind: input, shape index: {}]
  %s6 = inlined_call_operand.hbm [shape: f32[1,32], index: 6, kind: input, shape index: {}]
  %s7 = inlined_call_operand.hbm [shape: f32[1,32], index: 7, kind: input, shape index: {}]
  %s8 = inlined_call_operand.vmem [shape: f32[1,32], index: 8, kind: input, shape index: {}]
  %s9 = inlined_call_operand.hbm [shape: f32[3,32,32], index: 9, kind: input, shape index: {}]
  %s10 = inlined_call_operand.hbm [shape: f32[3,32,32], index: 10, kind: input, shape index: {}]
  %s11 = inlined_call_operand.vmem [shape: f32[3,1,32], index: 11, kind: input, shape index: {}]
  %s12 = inlined_call_operand.hbm [shape: f32[3,32,32], index: 12, kind: input, shape index: {}]
  %s13 = inlined_call_operand.vmem [shape: f32[3,1,32], index: 13, kind: input, shape index: {}]
  %s14 = inlined_call_operand.hbm [shape: f32[2,8,32], index: 14, kind: output, shape index: {}]
  %s15 = sld [smem:[#allocation0]]
  $region110: #{tpu_custom_call.1} parent=0
    _
  %s17 = ssub.s32 1, %s15
  %s18 = scalar_select 0, %s17, %s15
  $region1: #{tpu_custom_call.1} parent=0
    #allocation2 [shape = 'u8[8192]{0}', space=vmem, size = 0x2000, scoped, tag = 'input window, operand 0, single buffered']
    #allocation3 [shape = 's32[1]{0}', space=sflag, size = 0x4, scoped, tag = 'scoped memory for tpu_custom_call.1']
    #allocation4 [shape = 's32[1]{0}', space=sflag, size = 0x4, scoped, tag = 'scoped memory for tpu_custom_call.1']
    #allocation5 [shape = 'u8[8192]{0}', space=vmem, size = 0x2000, scoped, tag = 'input window, operand 1, single buffered']
    #allocation6 [shape = 's32[1]{0}', space=sflag, size = 0x4, scoped, tag = 'scoped memory for tpu_custom_call.1']
    #allocation7 [shape = 'u8[8192]{0}', space=vmem, size = 0x2000, scoped, tag = 'input window, operand 2, single buffered']
    #allocation8 [shape = 'u8[16384]{0}', space=vmem, size = 0x4000, scoped, tag = 'input window, operand 3, single buffered']
    #allocation9 [shape = 's32[1]{0}', space=sflag, size = 0x4, scoped, tag = 'scoped memory for tpu_custom_call.1']
    #allocation10 [shape = 'u8[512]{0}', space=vmem, size = 0x400, scoped, tag = 'input window, operand 4, single buffered']
    #allocation11 [shape = 'u8[16384]{0}', space=vmem, size = 0x4000, scoped, tag = 'input window, operand 5, single buffered']
    #allocation12 [shape = 's32[1]{0}', space=sflag, size = 0x4, scoped, tag = 'scoped memory for tpu_custom_call.1']
    #allocation13 [shape = 'u8[512]{0}', space=vmem, size = 0x400, scoped, tag = 'input window, operand 6, single buffered']
    #allocation14 [shape = 'u8[512]{0}', space=vmem, size = 0x400, scoped, tag = 'input window, operand 7, single buffered']
    #allocation15 [shape = 's32[1]{0}', space=sflag, size = 0x4, scoped, tag = 'scoped memory for tpu_custom_call.1']
    #allocation16 [shape = 'u8[49152]{0}', space=vmem, size = 0xc000, scoped, tag = 'input window, operand 9, single buffered']
    #allocation17 [shape = 'u8[49152]{0}', space=vmem, size = 0xc000, scoped, tag = 'input window, operand 10, single buffered']
    #allocation18 [shape = 's32[1]{0}', space=sflag, size = 0x4, scoped, tag = 'scoped memory for tpu_custom_call.1']
    #allocation19 [shape = 'u8[49152]{0}', space=vmem, size = 0xc000, scoped, tag = 'input window, operand 12, single buffered']
    #allocation20 [shape = 'u8[8192]{0}', space=vmem, size = 0x2000, scoped, tag = 'output window, operand 0, single buffered']
    %19 = vsyncpa [#allocation3], 0
    %20 = vsyncpa [#allocation6], 0
    %21 = vsyncpa [#allocation9], 0
    %22 = vsyncpa [#allocation12], 0
    %23 = vsyncpa [#allocation15], 0
    %24 = vsyncpa [#allocation18], 0
    %25 = vsyncpa [#allocation4], 0
    // Predicated region
    $region2: #{tpu_custom_call.1} parent=1 // pred_check
      _
    $region3: #{tpu_custom_call.1} parent=1 // pred_check_branch
      %27 = sbr.rel (0) target = $region5
    $region4: #{tpu_custom_call.1} parent=1 // pred_region
      %29 = vsyncadd [#allocation3], 0
      %s30 = sshll.u32 %s0, 4
      %s31 = int_to_ptr.hbm [resolvable:$true] %s30
      %s32 = sshll.u32 [#allocation2], 4
      %s33 = int_to_ptr.vmem [resolvable:$true] %s32
      %38 = dma.hbm_to_vmem [thread:$0]  %s31, 256, %s33, [#allocation3], 128, 128, 8
    $region5: #{tpu_custom_call.1} parent=1 // pred_fallthru
      _
    // Predicated region
    $region6: #{tpu_custom_call.1} parent=1 // pred_check
      _
    $region7: #{tpu_custom_call.1} parent=1 // pred_check_branch
      %40 = sbr.rel (0) target = $region9
    $region8: #{tpu_custom_call.1} parent=1 // pred_region
      %42 = vsyncadd [#allocation6], 0
      %s43 = sshll.u32 %s1, 4
      %s44 = int_to_ptr.hbm [resolvable:$true] %s43
      %s45 = sshll.u32 [#allocation5], 4
      %s46 = int_to_ptr.vmem [resolvable:$true] %s45
      %51 = dma.hbm_to_vmem [thread:$0]  %s44, 256, %s46, [#allocation6], 128, 128, 8
    $region9: #{tpu_custom_call.1} parent=1 // pred_fallthru
      _
    // Predicated region
    $region10: #{tpu_custom_call.1} parent=1 // pred_check
      _
    $region11: #{tpu_custom_call.1} parent=1 // pred_check_branch
      %53 = sbr.rel (0) target = $region13
    $region12: #{tpu_custom_call.1} parent=1 // pred_region
      %55 = vsyncadd [#allocation6], 0
      %s56 = sshll.u32 %s2, 4
      %s57 = int_to_ptr.hbm [resolvable:$true] %s56
      %s58 = sshll.u32 [#allocation7], 4
      %s59 = int_to_ptr.vmem [resolvable:$true] %s58
      %64 = dma.hbm_to_vmem [thread:$0]  %s57, 256, %s59, [#allocation6], 128, 128, 8
    $region13: #{tpu_custom_call.1} parent=1 // pred_fallthru
      _
    // Predicated region
    $region14: #{tpu_custom_call.1} parent=1 // pred_check
      _
    $region15: #{tpu_custom_call.1} parent=1 // pred_check_branch
      %66 = sbr.rel (0) target = $region17
    $region16: #{tpu_custom_call.1} parent=1 // pred_region
      %68 = vsyncadd [#allocation9], 0
      %s69 = sshll.u32 %s3, 4
      %s70 = int_to_ptr.hbm [resolvable:$true] %s69
      %s71 = sshll.u32 [#allocation8], 4
      %s72 = int_to_ptr.vmem [resolvable:$true] %s71
      %77 = dma.hbm_to_vmem [thread:$0]  %s70, 512, %s72, [#allocation9], 128, 128, 8
    $region17: #{tpu_custom_call.1} parent=1 // pred_fallthru
      _
    // Predicated region
    $region18: #{tpu_custom_call.1} parent=1 // pred_check
      _
    $region19: #{tpu_custom_call.1} parent=1 // pred_check_branch
      %79 = sbr.rel (0) target = $region21
    $region20: #{tpu_custom_call.1} parent=1 // pred_region
      %81 = vsyncadd [#allocation9], 0
      %s83 = sshll.u32 %s4, 4
      %s84 = int_to_ptr.hbm [resolvable:$true] %s83
      %s85 = sshll.u32 [#allocation10], 4
      %s86 = int_to_ptr.vmem [resolvable:$true] %s85
      %88 = dma.hbm_to_vmem [thread:$0]  %s84, 16, %s86, [#allocation9]
    $region21: #{tpu_custom_call.1} parent=1 // pred_fallthru
      _
    // Predicated region
    $region22: #{tpu_custom_call.1} parent=1 // pred_check
      _
    $region23: #{tpu_custom_call.1} parent=1 // pred_check_branch
      %90 = sbr.rel (0) target = $region25
    $region24: #{tpu_custom_call.1} parent=1 // pred_region
      %92 = vsyncadd [#allocation12], 0
      %s93 = sshll.u32 %s5, 4
      %s94 = int_to_ptr.hbm [resolvable:$true] %s93
      %s95 = sshll.u32 [#allocation11], 4
      %s96 = int_to_ptr.vmem [resolvable:$true] %s95
      %101 = dma.hbm_to_vmem [thread:$0]  %s94, 512, %s96, [#allocation12], 128, 128, 8
    $region25: #{tpu_custom_call.1} parent=1 // pred_fallthru
      _
    // Predicated region
    $region26: #{tpu_custom_call.1} parent=1 // pred_check
      _
    $region27: #{tpu_custom_call.1} parent=1 // pred_check_branch
      %103 = sbr.rel (0) target = $region29
    $region28: #{tpu_custom_call.1} parent=1 // pred_region
      %105 = vsyncadd [#allocation12], 0
      %s107 = sshll.u32 %s6, 4
      %s108 = int_to_ptr.hbm [resolvable:$true] %s107
      %s109 = sshll.u32 [#allocation13], 4
      %s110 = int_to_ptr.vmem [resolvable:$true] %s109
      %112 = dma.hbm_to_vmem [thread:$0]  %s108, 16, %s110, [#allocation12]
    $region29: #{tpu_custom_call.1} parent=1 // pred_fallthru
      _
    // Predicated region
    $region30: #{tpu_custom_call.1} parent=1 // pred_check
      _
    $region31: #{tpu_custom_call.1} parent=1 // pred_check_branch
      %114 = sbr.rel (0) target = $region33
    $region32: #{tpu_custom_call.1} parent=1 // pred_region
      %116 = vsyncadd [#allocation15], 0
      %s118 = sshll.u32 %s7, 4
      %s119 = int_to_ptr.hbm [resolvable:$true] %s118
      %s120 = sshll.u32 [#allocation14], 4
      %s121 = int_to_ptr.vmem [resolvable:$true] %s120
      %123 = dma.hbm_to_vmem [thread:$0]  %s119, 16, %s121, [#allocation15]
    $region33: #{tpu_custom_call.1} parent=1 // pred_fallthru
      _
    // Predicated region
    $region34: #{tpu_custom_call.1} parent=1 // pred_check
      _
    $region35: #{tpu_custom_call.1} parent=1 // pred_check_branch
      %125 = sbr.rel (0) target = $region37
    $region36: #{tpu_custom_call.1} parent=1 // pred_region
      _
    $region37: #{tpu_custom_call.1} parent=1 // pred_fallthru
      _
    // Predicated region
    $region38: #{tpu_custom_call.1} parent=1 // pred_check
      _
    $region39: #{tpu_custom_call.1} parent=1 // pred_check_branch
      %127 = sbr.rel (0) target = $region41
    $region40: #{tpu_custom_call.1} parent=1 // pred_region
      %129 = vsyncadd [#allocation15], 0
      %s130 = sshll.u32 %s9, 4
      %s131 = int_to_ptr.hbm [resolvable:$true] %s130
      %s132 = sshll.u32 [#allocation16], 4
      %s133 = int_to_ptr.vmem [resolvable:$true] %s132
      %138 = dma.hbm_to_vmem [thread:$0]  %s131, 1536, %s133, [#allocation15], 128, 128, 8
    $region41: #{tpu_custom_call.1} parent=1 // pred_fallthru
      _
    // Predicated region
    $region42: #{tpu_custom_call.1} parent=1 // pred_check
      _
    $region43: #{tpu_custom_call.1} parent=1 // pred_check_branch
      %140 = sbr.rel (0) target = $region45
    $region44: #{tpu_custom_call.1} parent=1 // pred_region
      %142 = vsyncadd [#allocation18], 0
      %s143 = sshll.u32 %s10, 4
      %s144 = int_to_ptr.hbm [resolvable:$true] %s143
      %s145 = sshll.u32 [#allocation17], 4
      %s146 = int_to_ptr.vmem [resolvable:$true] %s145
      %151 = dma.hbm_to_vmem [thread:$0]  %s144, 1536, %s146, [#allocation18], 128, 128, 8
    $region45: #{tpu_custom_call.1} parent=1 // pred_fallthru
      _
    // Predicated region
    $region46: #{tpu_custom_call.1} parent=1 // pred_check
      _
    $region47: #{tpu_custom_call.1} parent=1 // pred_check_branch
      %153 = sbr.rel (0) target = $region49
    $region48: #{tpu_custom_call.1} parent=1 // pred_region
      _
    $region49: #{tpu_custom_call.1} parent=1 // pred_fallthru
      _
    // Predicated region
    $region50: #{tpu_custom_call.1} parent=1 // pred_check
      _
    $region51: #{tpu_custom_call.1} parent=1 // pred_check_branch
      %155 = sbr.rel (0) target = $region53
    $region52: #{tpu_custom_call.1} parent=1 // pred_region
      %157 = vsyncadd [#allocation18], 0
      %s158 = sshll.u32 %s12, 4
      %s159 = int_to_ptr.hbm [resolvable:$true] %s158
      %s160 = sshll.u32 [#allocation19], 4
      %s161 = int_to_ptr.vmem [resolvable:$true] %s160
      %166 = dma.hbm_to_vmem [thread:$0]  %s159, 1536, %s161, [#allocation18], 128, 128, 8
    $region53: #{tpu_custom_call.1} parent=1 // pred_fallthru
      _
    // Predicated region
    $region54: #{tpu_custom_call.1} parent=1 // pred_check
      _
    $region55: #{tpu_custom_call.1} parent=1 // pred_check_branch
      %168 = sbr.rel (0) target = $region57
    $region56: #{tpu_custom_call.1} parent=1 // pred_region
      _
    $region57: #{tpu_custom_call.1} parent=1 // pred_fallthru
      _
    // Predicated region
    $region58: #{tpu_custom_call.1} parent=1 // pred_check
      _
    $region59: #{tpu_custom_call.1} parent=1 // pred_check_branch
      %170 = sbr.rel (0) target = $region61
    $region60: #{tpu_custom_call.1} parent=1 // pred_region
      %172 = dma.done [#allocation3], 256
    $region61: #{tpu_custom_call.1} parent=1 // pred_fallthru
      _
    // Predicated region
    $region62: #{tpu_custom_call.1} parent=1 // pred_check
      _
    $region63: #{tpu_custom_call.1} parent=1 // pred_check_branch
      %174 = sbr.rel (0) target = $region65
    $region64: #{tpu_custom_call.1} parent=1 // pred_region
      %176 = dma.done [#allocation6], 256
    $region65: #{tpu_custom_call.1} parent=1 // pred_fallthru
      _
    // Predicated region
    $region66: #{tpu_custom_call.1} parent=1 // pred_check
      _
    $region67: #{tpu_custom_call.1} parent=1 // pred_check_branch
      %178 = sbr.rel (0) target = $region69
    $region68: #{tpu_custom_call.1} parent=1 // pred_region
      %180 = dma.done [#allocation6], 256
    $region69: #{tpu_custom_call.1} parent=1 // pred_fallthru
      _
    // Predicated region
    $region70: #{tpu_custom_call.1} parent=1 // pred_check
      _
    $region71: #{tpu_custom_call.1} parent=1 // pred_check_branch
      %182 = sbr.rel (0) target = $region73
    $region72: #{tpu_custom_call.1} parent=1 // pred_region
      %184 = dma.done [#allocation9], 512
    $region73: #{tpu_custom_call.1} parent=1 // pred_fallthru
      _
    // Predicated region
    $region74: #{tpu_custom_call.1} parent=1 // pred_check
      _
    $region75: #{tpu_custom_call.1} parent=1 // pred_check_branch
      %186 = sbr.rel (0) target = $region77
    $region76: #{tpu_custom_call.1} parent=1 // pred_region
      %188 = dma.done [#allocation9], 16
    $region77: #{tpu_custom_call.1} parent=1 // pred_fallthru
      _
    // Predicated region
    $region78: #{tpu_custom_call.1} parent=1 // pred_check
      _
    $region79: #{tpu_custom_call.1} parent=1 // pred_check_branch
      %190 = sbr.rel (0) target = $region81
    $region80: #{tpu_custom_call.1} parent=1 // pred_region
      %192 = dma.done [#allocation12], 512
    $region81: #{tpu_custom_call.1} parent=1 // pred_fallthru
      _
    // Predicated region
    $region82: #{tpu_custom_call.1} parent=1 // pred_check
      _
    $region83: #{tpu_custom_call.1} parent=1 // pred_check_branch
      %194 = sbr.rel (0) target = $region85
    $region84: #{tpu_custom_call.1} parent=1 // pred_region
      %196 = dma.done [#allocation12], 16
    $region85: #{tpu_custom_call.1} parent=1 // pred_fallthru
      _
    // Predicated region
    $region86: #{tpu_custom_call.1} parent=1 // pred_check
      _
    $region87: #{tpu_custom_call.1} parent=1 // pred_check_branch
      %198 = sbr.rel (0) target = $region89
    $region88: #{tpu_custom_call.1} parent=1 // pred_region
      %200 = dma.done [#allocation15], 16
    $region89: #{tpu_custom_call.1} parent=1 // pred_fallthru
      _
    // Predicated region
    $region90: #{tpu_custom_call.1} parent=1 // pred_check
      _
    $region91: #{tpu_custom_call.1} parent=1 // pred_check_branch
      %202 = sbr.rel (0) target = $region93
    $region92: #{tpu_custom_call.1} parent=1 // pred_region
      %204 = dma.done [#allocation15], 1536
    $region93: #{tpu_custom_call.1} parent=1 // pred_fallthru
      _
    // Predicated region
    $region94: #{tpu_custom_call.1} parent=1 // pred_check
      _
    $region95: #{tpu_custom_call.1} parent=1 // pred_check_branch
      %206 = sbr.rel (0) target = $region97
    $region96: #{tpu_custom_call.1} parent=1 // pred_region
      %208 = dma.done [#allocation18], 1536
    $region97: #{tpu_custom_call.1} parent=1 // pred_fallthru
      _
    // Predicated region
    $region98: #{tpu_custom_call.1} parent=1 // pred_check
      _
    $region99: #{tpu_custom_call.1} parent=1 // pred_check_branch
      %210 = sbr.rel (0) target = $region101
    $region100: #{tpu_custom_call.1} parent=1 // pred_region
      %212 = dma.done [#allocation18], 1536
    $region101: #{tpu_custom_call.1} parent=1 // pred_fallthru
      _
    %v213 = vld [vmem:[#allocation2] sm:$0xff]
    %v214 = vld [vmem:[#allocation2 + $0x8] sm:$0xff]
    %v215 = vld [vmem:[#allocation5] sm:$0xff]
    %v216 = vld [vmem:[#allocation5 + $0x8] sm:$0xff]
    %v217 = vld [vmem:[#allocation8] sm:$0xff]
    %v218 = vld [vmem:[#allocation8 + $0x8] sm:$0xff]
    %v219 = vld [vmem:[#allocation8 + $0x10] sm:$0xff]
    %v220 = vld [vmem:[#allocation8 + $0x18] sm:$0xff]
    %v221 = vld [vmem:[#allocation11] sm:$0xff]
    %v222 = vld [vmem:[#allocation11 + $0x8] sm:$0xff]
    %v223 = vld [vmem:[#allocation11 + $0x10] sm:$0xff]
    %v224 = vld [vmem:[#allocation11 + $0x18] sm:$0xff]
    %v225 = vld [vmem:[#allocation10] sm:$0x1]
    %v226 = vld [vmem:[#allocation13] sm:$0x1]
    %v227 = vld [vmem:[#allocation14] sm:$0x1]
    %v228 = vld [vmem:[%s8] sm:$0x1]
    %v229 = vld [vmem:[#allocation7] sm:$0xff]
    %v230 = vld [vmem:[#allocation7 + $0x8] sm:$0xff]
    %v232 = vperm.slane %v225, 0
    %vm234 = vcmask 261120
    %v236 = vsel %vm234, %v229, 0
    %v239 = vsel %vm234, %v230, 0
    %241 = vmatpush.msra.mxu0 0.0
    %242 = vmatpush.msra.mxu0 0.0
    %243 = vmatpush.msra.mxu0 0.0
    %244 = vmatpush.msra.mxu0 0.0
    %245 = vmatpush.msra.mxu0 0.0
    %246 = vmatpush.msra.mxu0 0.0
    %247 = vmatpush.msra.mxu0 0.0
    %248 = vmatpush.msra.mxu0 0.0
    %249 = vmatpush.msra.mxu0 0.0
    %250 = vmatpush.msra.mxu0 0.0
    %251 = vmatpush.msra.mxu0 0.0
    %252 = vmatpush.msra.mxu0 0.0
    %253 = vmatpush.msra.mxu0 %v220
    %254 = vmatpush.msra.mxu0 %v219
    %255 = vmatpush.msra.mxu0 %v218
    %256 = vmatpush.msra.mxu0 %v217
    %257 = vmatmul.f32.gmra.mxu0 %v236
    %v258 = vpop.f32.mrf.mxu0
    %v259 = vadd.f32 %v232, %v258
    %260 = vmatmul.f32.gmra.mxu0 %v239
    %v261 = vpop.f32.mrf.mxu0
    %v262 = vadd.f32 %v232, %v261
    %263 = vdwg.mxu0
    %v265 = vperm.slane %v226, 0
    %267 = vmatpush.msra.mxu0 0.0
    %268 = vmatpush.msra.mxu0 0.0
    %269 = vmatpush.msra.mxu0 0.0
    %270 = vmatpush.msra.mxu0 0.0
    %271 = vmatpush.msra.mxu0 0.0
    %272 = vmatpush.msra.mxu0 0.0
    %273 = vmatpush.msra.mxu0 0.0
    %274 = vmatpush.msra.mxu0 0.0
    %275 = vmatpush.msra.mxu0 0.0
    %276 = vmatpush.msra.mxu0 0.0
    %277 = vmatpush.msra.mxu0 0.0
    %278 = vmatpush.msra.mxu0 0.0
    %279 = vmatpush.msra.mxu0 %v224
    %280 = vmatpush.msra.mxu0 %v223
    %281 = vmatpush.msra.mxu0 %v222
    %282 = vmatpush.msra.mxu0 %v221
    %283 = vmatmul.f32.gmra.mxu0 %v236
    %v284 = vpop.f32.mrf.mxu0
    %v285 = vadd.f32 %v265, %v284
    %286 = vmatmul.f32.gmra.mxu0 %v239
    %v287 = vpop.f32.mrf.mxu0
    %v288 = vadd.f32 %v265, %v287
    %289 = vdwg.mxu0
    %vm290 = vcmask 64512
    %v292 = vsel %vm290, %v213, 0
    %294 = vmatpush.msra.mxu0 0.0
    %295 = vmatpush.msra.mxu0 0.0
    %296 = vmatpush.msra.mxu0 0.0
    %297 = vmatpush.msra.mxu0 0.0
    %298 = vmatpush.msra.mxu0 0.0
    %299 = vmatpush.msra.mxu0 0.0
    %300 = vmatpush.msra.mxu0 0.0
    %301 = vmatpush.msra.mxu0 0.0
    %302 = vmatpush.msra.mxu0 0.0
    %303 = vmatpush.msra.mxu0 0.0
    %304 = vmatpush.msra.mxu0 0.0
    %305 = vmatpush.msra.mxu0 0.0
    %306 = vmatpush.msra.mxu0 0.0
    %307 = vmatpush.msra.mxu0 0.0
    %308 = vmatpush.msra.mxu0 0.0
    %309 = vmatpush.msra.mxu0 %v259
    %310 = vmatmul.f32.gmra.mxu0 %v292
    %v311 = vpop.f32.mrf.mxu0
    %v312 = vadd.f32 0.0, %v311
    %313 = vdwg.mxu0
    %v315 = vsel %vm290, %v214, 0
    %317 = vmatpush.msra.mxu0 0.0
    %318 = vmatpush.msra.mxu0 0.0
    %319 = vmatpush.msra.mxu0 0.0
    %320 = vmatpush.msra.mxu0 0.0
    %321 = vmatpush.msra.mxu0 0.0
    %322 = vmatpush.msra.mxu0 0.0
    %323 = vmatpush.msra.mxu0 0.0
    %324 = vmatpush.msra.mxu0 0.0
    %325 = vmatpush.msra.mxu0 0.0
    %326 = vmatpush.msra.mxu0 0.0
    %327 = vmatpush.msra.mxu0 0.0
    %328 = vmatpush.msra.mxu0 0.0
    %329 = vmatpush.msra.mxu0 0.0
    %330 = vmatpush.msra.mxu0 0.0
    %331 = vmatpush.msra.mxu0 0.0
    %332 = vmatpush.msra.mxu0 %v262
    %333 = vmatmul.f32.gmra.mxu0 %v315
    %v334 = vpop.f32.mrf.mxu0
    %v335 = vadd.f32 0.0, %v334
    %336 = vdwg.mxu0
    %v338 = vperm.slane %v227, 0
    %v340 = vadd.f32 %v312, %v338
    %v341 = vadd.f32 %v335, %v338
    %v343 = vsel %vm290, %v215, 0
    %345 = vmatpush.msra.mxu0 0.0
    %346 = vmatpush.msra.mxu0 0.0
    %347 = vmatpush.msra.mxu0 0.0
    %348 = vmatpush.msra.mxu0 0.0
    %349 = vmatpush.msra.mxu0 0.0
    %350 = vmatpush.msra.mxu0 0.0
    %351 = vmatpush.msra.mxu0 0.0
    %352 = vmatpush.msra.mxu0 0.0
    %353 = vmatpush.msra.mxu0 0.0
    %354 = vmatpush.msra.mxu0 0.0
    %355 = vmatpush.msra.mxu0 0.0
    %356 = vmatpush.msra.mxu0 0.0
    %357 = vmatpush.msra.mxu0 0.0
    %358 = vmatpush.msra.mxu0 0.0
    %359 = vmatpush.msra.mxu0 0.0
    %360 = vmatpush.msra.mxu0 %v285
    %361 = vmatmul.f32.gmra.mxu0 %v343
    %v362 = vpop.f32.mrf.mxu0
    %v363 = vadd.f32 0.0, %v362
    %364 = vdwg.mxu0
    %v366 = vsel %vm290, %v216, 0
    %368 = vmatpush.msra.mxu0 0.0
    %369 = vmatpush.msra.mxu0 0.0
    %370 = vmatpush.msra.mxu0 0.0
    %371 = vmatpush.msra.mxu0 0.0
    %372 = vmatpush.msra.mxu0 0.0
    %373 = vmatpush.msra.mxu0 0.0
    %374 = vmatpush.msra.mxu0 0.0
    %375 = vmatpush.msra.mxu0 0.0
    %376 = vmatpush.msra.mxu0 0.0
    %377 = vmatpush.msra.mxu0 0.0
    %378 = vmatpush.msra.mxu0 0.0
    %379 = vmatpush.msra.mxu0 0.0
    %380 = vmatpush.msra.mxu0 0.0
    %381 = vmatpush.msra.mxu0 0.0
    %382 = vmatpush.msra.mxu0 0.0
    %383 = vmatpush.msra.mxu0 %v288
    %384 = vmatmul.f32.gmra.mxu0 %v366
    %v385 = vpop.f32.mrf.mxu0
    %v386 = vadd.f32 0.0, %v385
    %387 = vdwg.mxu0
    %v389 = vperm.slane %v228, 0
    %v391 = vadd.f32 %v363, %v389
    %v392 = vadd.f32 %v386, %v389
    %v393 = vld [vmem:[#allocation16] sm:$0xff]
    %v394 = vld [vmem:[#allocation16 + $0x8] sm:$0xff]
    %v395 = vld [vmem:[#allocation16 + $0x10] sm:$0xff]
    %v396 = vld [vmem:[#allocation16 + $0x18] sm:$0xff]
    %v397 = vld [vmem:[#allocation17] sm:$0xff]
    %v398 = vld [vmem:[#allocation17 + $0x8] sm:$0xff]
    %v399 = vld [vmem:[#allocation17 + $0x10] sm:$0xff]
    %v400 = vld [vmem:[#allocation17 + $0x18] sm:$0xff]
    %v402 = vsel %vm234, %v391, 0
    %v405 = vsel %vm234, %v392, 0
    %407 = vmatpush.msra.mxu0 0.0
    %408 = vmatpush.msra.mxu0 0.0
    %409 = vmatpush.msra.mxu0 0.0
    %410 = vmatpush.msra.mxu0 0.0
    %411 = vmatpush.msra.mxu0 0.0
    %412 = vmatpush.msra.mxu0 0.0
    %413 = vmatpush.msra.mxu0 0.0
    %414 = vmatpush.msra.mxu0 0.0
    %415 = vmatpush.msra.mxu0 0.0
    %416 = vmatpush.msra.mxu0 0.0
    %417 = vmatpush.msra.mxu0 0.0
    %418 = vmatpush.msra.mxu0 0.0
    %419 = vmatpush.msra.mxu0 %v400
    %420 = vmatpush.msra.mxu0 %v399
    %421 = vmatpush.msra.mxu0 %v398
    %422 = vmatpush.msra.mxu0 %v397
    %423 = vmatmul.f32.gmra.mxu0 %v402
    %v424 = vpop.f32.mrf.mxu0
    %v425 = vadd.f32 0.0, %v424
    %426 = vmatmul.f32.gmra.mxu0 %v405
    %v427 = vpop.f32.mrf.mxu0
    %v428 = vadd.f32 0.0, %v427
    %429 = vdwg.mxu0
    %v431 = vsel %vm234, %v340, 0
    %v434 = vsel %vm234, %v341, 0
    %436 = vmatpush.msra.mxu0 0.0
    %437 = vmatpush.msra.mxu0 0.0
    %438 = vmatpush.msra.mxu0 0.0
    %439 = vmatpush.msra.mxu0 0.0
    %440 = vmatpush.msra.mxu0 0.0
    %441 = vmatpush.msra.mxu0 0.0
    %442 = vmatpush.msra.mxu0 0.0
    %443 = vmatpush.msra.mxu0 0.0
    %444 = vmatpush.msra.mxu0 0.0
    %445 = vmatpush.msra.mxu0 0.0
    %446 = vmatpush.msra.mxu0 0.0
    %447 = vmatpush.msra.mxu0 0.0
    %448 = vmatpush.msra.mxu0 %v396
    %449 = vmatpush.msra.mxu0 %v395
    %450 = vmatpush.msra.mxu0 %v394
    %451 = vmatpush.msra.mxu0 %v393
    %452 = vmatmul.f32.gmra.mxu0 %v431
    %v453 = vpop.f32.mrf.mxu0
    %v454 = vadd.f32 %v425, %v453
    %455 = vmatmul.f32.gmra.mxu0 %v434
    %v456 = vpop.f32.mrf.mxu0
    %v457 = vadd.f32 %v428, %v456
    %458 = vdwg.mxu0
    %v459 = vld [vmem:[%s11] sm:$0x1]
    %v461 = vperm.slane %v459, 0
    %v463 = vadd.f32 %v454, %v461
    %v464 = vadd.f32 %v457, %v461
    %v465 = vld [vmem:[#allocation19] sm:$0xff]
    %v466 = vld [vmem:[#allocation19 + $0x8] sm:$0xff]
    %v467 = vld [vmem:[#allocation19 + $0x10] sm:$0xff]
    %v468 = vld [vmem:[#allocation19 + $0x18] sm:$0xff]
    %v469 = vld [vmem:[%s13] sm:$0x1]
    %v471 = vperm.slane %v469, 0
    %473 = vmatpush.msra.mxu0 0.0
    %474 = vmatpush.msra.mxu0 0.0
    %475 = vmatpush.msra.mxu0 0.0
    %476 = vmatpush.msra.mxu0 0.0
    %477 = vmatpush.msra.mxu0 0.0
    %478 = vmatpush.msra.mxu0 0.0
    %479 = vmatpush.msra.mxu0 0.0
    %480 = vmatpush.msra.mxu0 0.0
    %481 = vmatpush.msra.mxu0 0.0
    %482 = vmatpush.msra.mxu0 0.0
    %483 = vmatpush.msra.mxu0 0.0
    %484 = vmatpush.msra.mxu0 0.0
    %485 = vmatpush.msra.mxu0 %v468
    %486 = vmatpush.msra.mxu0 %v467
    %487 = vmatpush.msra.mxu0 %v466
    %488 = vmatpush.msra.mxu0 %v465
    %489 = vmatmul.f32.gmra.mxu0 %v236
    %v490 = vpop.f32.mrf.mxu0
    %v491 = vadd.f32 %v471, %v490
    %492 = vmatmul.f32.gmra.mxu0 %v239
    %v493 = vpop.f32.mrf.mxu0
    %v494 = vadd.f32 %v471, %v493
    %495 = vdwg.mxu0
    %s496 = scalar_lea.vmem [#allocation16], 32
    %v497 = vld [vmem:[%s496] sm:$0xff]
    %v498 = vld [vmem:[%s496 + $0x8] sm:$0xff]
    %v499 = vld [vmem:[%s496 + $0x10] sm:$0xff]
    %v500 = vld [vmem:[%s496 + $0x18] sm:$0xff]
    %s501 = scalar_lea.vmem [#allocation17], 32
    %v502 = vld [vmem:[%s501] sm:$0xff]
    %v503 = vld [vmem:[%s501 + $0x8] sm:$0xff]
    %v504 = vld [vmem:[%s501 + $0x10] sm:$0xff]
    %v505 = vld [vmem:[%s501 + $0x18] sm:$0xff]
    %506 = vmatpush.msra.mxu0 0.0
    %507 = vmatpush.msra.mxu0 0.0
    %508 = vmatpush.msra.mxu0 0.0
    %509 = vmatpush.msra.mxu0 0.0
    %510 = vmatpush.msra.mxu0 0.0
    %511 = vmatpush.msra.mxu0 0.0
    %512 = vmatpush.msra.mxu0 0.0
    %513 = vmatpush.msra.mxu0 0.0
    %514 = vmatpush.msra.mxu0 0.0
    %515 = vmatpush.msra.mxu0 0.0
    %516 = vmatpush.msra.mxu0 0.0
    %517 = vmatpush.msra.mxu0 0.0
    %518 = vmatpush.msra.mxu0 %v505
    %519 = vmatpush.msra.mxu0 %v504
    %520 = vmatpush.msra.mxu0 %v503
    %521 = vmatpush.msra.mxu0 %v502
    %522 = vmatmul.f32.gmra.mxu0 %v402
    %v523 = vpop.f32.mrf.mxu0
    %v524 = vadd.f32 0.0, %v523
    %525 = vmatmul.f32.gmra.mxu0 %v405
    %v526 = vpop.f32.mrf.mxu0
    %v527 = vadd.f32 0.0, %v526
    %528 = vdwg.mxu0
    %529 = vmatpush.msra.mxu0 0.0
    %530 = vmatpush.msra.mxu0 0.0
    %531 = vmatpush.msra.mxu0 0.0
    %532 = vmatpush.msra.mxu0 0.0
    %533 = vmatpush.msra.mxu0 0.0
    %534 = vmatpush.msra.mxu0 0.0
    %535 = vmatpush.msra.mxu0 0.0
    %536 = vmatpush.msra.mxu0 0.0
    %537 = vmatpush.msra.mxu0 0.0
    %538 = vmatpush.msra.mxu0 0.0
    %539 = vmatpush.msra.mxu0 0.0
    %540 = vmatpush.msra.mxu0 0.0
    %541 = vmatpush.msra.mxu0 %v500
    %542 = vmatpush.msra.mxu0 %v499
    %543 = vmatpush.msra.mxu0 %v498
    %544 = vmatpush.msra.mxu0 %v497
    %545 = vmatmul.f32.gmra.mxu0 %v431
    %v546 = vpop.f32.mrf.mxu0
    %v547 = vadd.f32 %v524, %v546
    %548 = vmatmul.f32.gmra.mxu0 %v434
    %v549 = vpop.f32.mrf.mxu0
    %v550 = vadd.f32 %v527, %v549
    %551 = vdwg.mxu0
    %s552 = scalar_lea.vmem %s11, 1
    %v553 = vld [vmem:[%s552] sm:$0x1]
    %v555 = vperm.slane %v553, 0
    %v557 = vadd.f32 %v547, %v555
    %v558 = vadd.f32 %v550, %v555
    %s559 = scalar_lea.vmem [#allocation19], 32
    %v560 = vld [vmem:[%s559] sm:$0xff]
    %v561 = vld [vmem:[%s559 + $0x8] sm:$0xff]
    %v562 = vld [vmem:[%s559 + $0x10] sm:$0xff]
    %v563 = vld [vmem:[%s559 + $0x18] sm:$0xff]
    %s564 = scalar_lea.vmem %s13, 1
    %v565 = vld [vmem:[%s564] sm:$0x1]
    %v567 = vperm.slane %v565, 0
    %569 = vmatpush.msra.mxu0 0.0
    %570 = vmatpush.msra.mxu0 0.0
    %571 = vmatpush.msra.mxu0 0.0
    %572 = vmatpush.msra.mxu0 0.0
    %573 = vmatpush.msra.mxu0 0.0
    %574 = vmatpush.msra.mxu0 0.0
    %575 = vmatpush.msra.mxu0 0.0
    %576 = vmatpush.msra.mxu0 0.0
    %577 = vmatpush.msra.mxu0 0.0
    %578 = vmatpush.msra.mxu0 0.0
    %579 = vmatpush.msra.mxu0 0.0
    %580 = vmatpush.msra.mxu0 0.0
    %581 = vmatpush.msra.mxu0 %v563
    %582 = vmatpush.msra.mxu0 %v562
    %583 = vmatpush.msra.mxu0 %v561
    %584 = vmatpush.msra.mxu0 %v560
    %585 = vmatmul.f32.gmra.mxu0 %v236
    %v586 = vpop.f32.mrf.mxu0
    %v587 = vadd.f32 %v567, %v586
    %588 = vmatmul.f32.gmra.mxu0 %v239
    %v589 = vpop.f32.mrf.mxu0
    %v590 = vadd.f32 %v567, %v589
    %591 = vdwg.mxu0
    %s592 = scalar_lea.vmem [#allocation16], 64
    %v593 = vld [vmem:[%s592] sm:$0xff]
    %v594 = vld [vmem:[%s592 + $0x8] sm:$0xff]
    %v595 = vld [vmem:[%s592 + $0x10] sm:$0xff]
    %v596 = vld [vmem:[%s592 + $0x18] sm:$0xff]
    %s597 = scalar_lea.vmem [#allocation17], 64
    %v598 = vld [vmem:[%s597] sm:$0xff]
    %v599 = vld [vmem:[%s597 + $0x8] sm:$0xff]
    %v600 = vld [vmem:[%s597 + $0x10] sm:$0xff]
    %v601 = vld [vmem:[%s597 + $0x18] sm:$0xff]
    %602 = vmatpush.msra.mxu0 0.0
    %603 = vmatpush.msra.mxu0 0.0
    %604 = vmatpush.msra.mxu0 0.0
    %605 = vmatpush.msra.mxu0 0.0
    %606 = vmatpush.msra.mxu0 0.0
    %607 = vmatpush.msra.mxu0 0.0
    %608 = vmatpush.msra.mxu0 0.0
    %609 = vmatpush.msra.mxu0 0.0
    %610 = vmatpush.msra.mxu0 0.0
    %611 = vmatpush.msra.mxu0 0.0
    %612 = vmatpush.msra.mxu0 0.0
    %613 = vmatpush.msra.mxu0 0.0
    %614 = vmatpush.msra.mxu0 %v601
    %615 = vmatpush.msra.mxu0 %v600
    %616 = vmatpush.msra.mxu0 %v599
    %617 = vmatpush.msra.mxu0 %v598
    %618 = vmatmul.f32.gmra.mxu0 %v402
    %v619 = vpop.f32.mrf.mxu0
    %v620 = vadd.f32 0.0, %v619
    %621 = vmatmul.f32.gmra.mxu0 %v405
    %v622 = vpop.f32.mrf.mxu0
    %v623 = vadd.f32 0.0, %v622
    %624 = vdwg.mxu0
    %625 = vmatpush.msra.mxu0 0.0
    %626 = vmatpush.msra.mxu0 0.0
    %627 = vmatpush.msra.mxu0 0.0
    %628 = vmatpush.msra.mxu0 0.0
    %629 = vmatpush.msra.mxu0 0.0
    %630 = vmatpush.msra.mxu0 0.0
    %631 = vmatpush.msra.mxu0 0.0
    %632 = vmatpush.msra.mxu0 0.0
    %633 = vmatpush.msra.mxu0 0.0
    %634 = vmatpush.msra.mxu0 0.0
    %635 = vmatpush.msra.mxu0 0.0
    %636 = vmatpush.msra.mxu0 0.0
    %637 = vmatpush.msra.mxu0 %v596
    %638 = vmatpush.msra.mxu0 %v595
    %639 = vmatpush.msra.mxu0 %v594
    %640 = vmatpush.msra.mxu0 %v593
    %641 = vmatmul.f32.gmra.mxu0 %v431
    %v642 = vpop.f32.mrf.mxu0
    %v643 = vadd.f32 %v620, %v642
    %644 = vmatmul.f32.gmra.mxu0 %v434
    %v645 = vpop.f32.mrf.mxu0
    %v646 = vadd.f32 %v623, %v645
    %647 = vdwg.mxu0
    %s648 = scalar_lea.vmem %s11, 2
    %v649 = vld [vmem:[%s648] sm:$0x1]
    %v651 = vperm.slane %v649, 0
    %v653 = vadd.f32 %v643, %v651
    %v654 = vadd.f32 %v646, %v651
    %s655 = scalar_lea.vmem [#allocation19], 64
    %v656 = vld [vmem:[%s655] sm:$0xff]
    %v657 = vld [vmem:[%s655 + $0x8] sm:$0xff]
    %v658 = vld [vmem:[%s655 + $0x10] sm:$0xff]
    %v659 = vld [vmem:[%s655 + $0x18] sm:$0xff]
    %s660 = scalar_lea.vmem %s13, 2
    %v661 = vld [vmem:[%s660] sm:$0x1]
    %v663 = vperm.slane %v661, 0
    %665 = vmatpush.msra.mxu0 0.0
    %666 = vmatpush.msra.mxu0 0.0
    %667 = vmatpush.msra.mxu0 0.0
    %668 = vmatpush.msra.mxu0 0.0
    %669 = vmatpush.msra.mxu0 0.0
    %670 = vmatpush.msra.mxu0 0.0
    %671 = vmatpush.msra.mxu0 0.0
    %672 = vmatpush.msra.mxu0 0.0
    %673 = vmatpush.msra.mxu0 0.0
    %674 = vmatpush.msra.mxu0 0.0
    %675 = vmatpush.msra.mxu0 0.0
    %676 = vmatpush.msra.mxu0 0.0
    %677 = vmatpush.msra.mxu0 %v659
    %678 = vmatpush.msra.mxu0 %v658
    %679 = vmatpush.msra.mxu0 %v657
    %680 = vmatpush.msra.mxu0 %v656
    %681 = vmatmul.f32.gmra.mxu0 %v236
    %v682 = vpop.f32.mrf.mxu0
    %v683 = vadd.f32 %v663, %v682
    %684 = vmatmul.f32.gmra.mxu0 %v239
    %v685 = vpop.f32.mrf.mxu0
    %v686 = vadd.f32 %v663, %v685
    %687 = vdwg.mxu0
    %v688 = vadd.f32 %v463, %v491
    %v689 = vadd.f32 %v464, %v494
    %v690 = vxor.u32 %v688, 2147483648
    %v691 = vxor.u32 %v689, 2147483648
    %v692 = vmul.f32 %v690, 1.442695
    %v693 = vpow.pop %v692
    %v694 = vmul.f32 %v691, 1.442695
    %v695 = vpow.pop %v694
    %v696 = vadd.f32 %v693, 1.0
    %v697 = vadd.f32 %v695, 1.0
    %v698 = vrcp.pop %v696
    %v699 = vmul.f32 %v696, %v698
    %v700 = vsub.f32 1.0, %v699
    %v701 = vmul.f32 %v698, %v700
    %v702 = vadd.f32 %v698, %v701
    %vm703 = vweird.f32 %v696
    %vm704 = vweird.f32 %v698
    %vm705 = vmor %vm703, %vm704
    %v706 = vsel %vm705, %v698, %v702
    %v707 = vand.u32 2147483647, %v696
    %vm708 = vcmp.eq.f32.partialorder %v707, 8.507059e+37
    %v709 = vand.u32 %v696, 2147483648
    %v710 = vor.u32 1.1754944e-38, %v709
    %v711 = vsel %vm708, %v710, %v706
    %v712 = vmul.f32 1.0, %v711
    %v713 = vrcp.pop %v697
    %v714 = vmul.f32 %v697, %v713
    %v715 = vsub.f32 1.0, %v714
    %v716 = vmul.f32 %v713, %v715
    %v717 = vadd.f32 %v713, %v716
    %vm718 = vweird.f32 %v697
    %vm719 = vweird.f32 %v713
    %vm720 = vmor %vm718, %vm719
    %v721 = vsel %vm720, %v713, %v717
    %v722 = vand.u32 2147483647, %v697
    %vm723 = vcmp.eq.f32.partialorder %v722, 8.507059e+37
    %v724 = vand.u32 %v697, 2147483648
    %v725 = vor.u32 1.1754944e-38, %v724
    %v726 = vsel %vm723, %v725, %v721
    %v727 = vmul.f32 1.0, %v726
    %v728 = vadd.f32 %v557, %v587
    %v729 = vadd.f32 %v558, %v590
    %v730 = vxor.u32 %v728, 2147483648
    %v731 = vxor.u32 %v729, 2147483648
    %v732 = vmul.f32 %v730, 1.442695
    %v733 = vpow.pop %v732
    %v734 = vmul.f32 %v731, 1.442695
    %v735 = vpow.pop %v734
    %v736 = vadd.f32 %v733, 1.0
    %v737 = vadd.f32 %v735, 1.0
    %v738 = vrcp.pop %v736
    %v739 = vmul.f32 %v736, %v738
    %v740 = vsub.f32 1.0, %v739
    %v741 = vmul.f32 %v738, %v740
    %v742 = vadd.f32 %v738, %v741
    %vm743 = vweird.f32 %v736
    %vm744 = vweird.f32 %v738
    %vm745 = vmor %vm743, %vm744
    %v746 = vsel %vm745, %v738, %v742
    %v747 = vand.u32 2147483647, %v736
    %vm748 = vcmp.eq.f32.partialorder %v747, 8.507059e+37
    %v749 = vand.u32 %v736, 2147483648
    %v750 = vor.u32 1.1754944e-38, %v749
    %v751 = vsel %vm748, %v750, %v746
    %v752 = vmul.f32 1.0, %v751
    %v753 = vrcp.pop %v737
    %v754 = vmul.f32 %v737, %v753
    %v755 = vsub.f32 1.0, %v754
    %v756 = vmul.f32 %v753, %v755
    %v757 = vadd.f32 %v753, %v756
    %vm758 = vweird.f32 %v737
    %vm759 = vweird.f32 %v753
    %vm760 = vmor %vm758, %vm759
    %v761 = vsel %vm760, %v753, %v757
    %v762 = vand.u32 2147483647, %v737
    %vm763 = vcmp.eq.f32.partialorder %v762, 8.507059e+37
    %v764 = vand.u32 %v737, 2147483648
    %v765 = vor.u32 1.1754944e-38, %v764
    %v766 = vsel %vm763, %v765, %v761
    %v767 = vmul.f32 1.0, %v766
    %v768 = vmul.f32 %v712, %v683
    %v769 = vmul.f32 %v727, %v686
    %v770 = vadd.f32 %v653, %v768
    %v771 = vadd.f32 %v654, %v769
    %v772 = vtanh.pop %v770
    %v773 = vtanh.pop %v771
    %v774 = vsub.f32 %v229, %v772
    %v775 = vsub.f32 %v230, %v773
    %v776 = vmul.f32 %v752, %v774
    %v777 = vmul.f32 %v767, %v775
    %v778 = vadd.f32 %v772, %v776
    %v779 = vadd.f32 %v773, %v777
    %v781 = vsel %vm234, %v778, 0
    %v784 = vsel %vm234, %v779, 0
    %786 = vmatpush.msra.mxu0 0.0
    %787 = vmatpush.msra.mxu0 0.0
    %788 = vmatpush.msra.mxu0 0.0
    %789 = vmatpush.msra.mxu0 0.0
    %790 = vmatpush.msra.mxu0 0.0
    %791 = vmatpush.msra.mxu0 0.0
    %792 = vmatpush.msra.mxu0 0.0
    %793 = vmatpush.msra.mxu0 0.0
    %794 = vmatpush.msra.mxu0 0.0
    %795 = vmatpush.msra.mxu0 0.0
    %796 = vmatpush.msra.mxu0 0.0
    %797 = vmatpush.msra.mxu0 0.0
    %798 = vmatpush.msra.mxu0 %v220
    %799 = vmatpush.msra.mxu0 %v219
    %800 = vmatpush.msra.mxu0 %v218
    %801 = vmatpush.msra.mxu0 %v217
    %802 = vmatmul.f32.gmra.mxu0 %v781
    %v803 = vpop.f32.mrf.mxu0
    %v804 = vadd.f32 %v232, %v803
    %805 = vmatmul.f32.gmra.mxu0 %v784
    %v806 = vpop.f32.mrf.mxu0
    %v807 = vadd.f32 %v232, %v806
    %808 = vdwg.mxu0
    %809 = vmatpush.msra.mxu0 0.0
    %810 = vmatpush.msra.mxu0 0.0
    %811 = vmatpush.msra.mxu0 0.0
    %812 = vmatpush.msra.mxu0 0.0
    %813 = vmatpush.msra.mxu0 0.0
    %814 = vmatpush.msra.mxu0 0.0
    %815 = vmatpush.msra.mxu0 0.0
    %816 = vmatpush.msra.mxu0 0.0
    %817 = vmatpush.msra.mxu0 0.0
    %818 = vmatpush.msra.mxu0 0.0
    %819 = vmatpush.msra.mxu0 0.0
    %820 = vmatpush.msra.mxu0 0.0
    %821 = vmatpush.msra.mxu0 %v224
    %822 = vmatpush.msra.mxu0 %v223
    %823 = vmatpush.msra.mxu0 %v222
    %824 = vmatpush.msra.mxu0 %v221
    %825 = vmatmul.f32.gmra.mxu0 %v781
    %v826 = vpop.f32.mrf.mxu0
    %v827 = vadd.f32 %v265, %v826
    %828 = vmatmul.f32.gmra.mxu0 %v784
    %v829 = vpop.f32.mrf.mxu0
    %v830 = vadd.f32 %v265, %v829
    %831 = vdwg.mxu0
    %832 = vmatpush.msra.mxu0 0.0
    %833 = vmatpush.msra.mxu0 0.0
    %834 = vmatpush.msra.mxu0 0.0
    %835 = vmatpush.msra.mxu0 0.0
    %836 = vmatpush.msra.mxu0 0.0
    %837 = vmatpush.msra.mxu0 0.0
    %838 = vmatpush.msra.mxu0 0.0
    %839 = vmatpush.msra.mxu0 0.0
    %840 = vmatpush.msra.mxu0 0.0
    %841 = vmatpush.msra.mxu0 0.0
    %842 = vmatpush.msra.mxu0 0.0
    %843 = vmatpush.msra.mxu0 0.0
    %844 = vmatpush.msra.mxu0 0.0
    %845 = vmatpush.msra.mxu0 0.0
    %846 = vmatpush.msra.mxu0 0.0
    %847 = vmatpush.msra.mxu0 %v804
    %848 = vmatmul.f32.gmra.mxu0 %v292
    %v849 = vpop.f32.mrf.mxu0
    %v850 = vadd.f32 0.0, %v849
    %851 = vdwg.mxu0
    %852 = vmatpush.msra.mxu0 0.0
    %853 = vmatpush.msra.mxu0 0.0
    %854 = vmatpush.msra.mxu0 0.0
    %855 = vmatpush.msra.mxu0 0.0
    %856 = vmatpush.msra.mxu0 0.0
    %857 = vmatpush.msra.mxu0 0.0
    %858 = vmatpush.msra.mxu0 0.0
    %859 = vmatpush.msra.mxu0 0.0
    %860 = vmatpush.msra.mxu0 0.0
    %861 = vmatpush.msra.mxu0 0.0
    %862 = vmatpush.msra.mxu0 0.0
    %863 = vmatpush.msra.mxu0 0.0
    %864 = vmatpush.msra.mxu0 0.0
    %865 = vmatpush.msra.mxu0 0.0
    %866 = vmatpush.msra.mxu0 0.0
    %867 = vmatpush.msra.mxu0 %v807
    %868 = vmatmul.f32.gmra.mxu0 %v315
    %v869 = vpop.f32.mrf.mxu0
    %v870 = vadd.f32 0.0, %v869
    %871 = vdwg.mxu0
    %v872 = vadd.f32 %v850, %v338
    %v873 = vadd.f32 %v870, %v338
    %874 = vmatpush.msra.mxu0 0.0
    %875 = vmatpush.msra.mxu0 0.0
    %876 = vmatpush.msra.mxu0 0.0
    %877 = vmatpush.msra.mxu0 0.0
    %878 = vmatpush.msra.mxu0 0.0
    %879 = vmatpush.msra.mxu0 0.0
    %880 = vmatpush.msra.mxu0 0.0
    %881 = vmatpush.msra.mxu0 0.0
    %882 = vmatpush.msra.mxu0 0.0
    %883 = vmatpush.msra.mxu0 0.0
    %884 = vmatpush.msra.mxu0 0.0
    %885 = vmatpush.msra.mxu0 0.0
    %886 = vmatpush.msra.mxu0 0.0
    %887 = vmatpush.msra.mxu0 0.0
    %888 = vmatpush.msra.mxu0 0.0
    %889 = vmatpush.msra.mxu0 %v827
    %890 = vmatmul.f32.gmra.mxu0 %v343
    %v891 = vpop.f32.mrf.mxu0
    %v892 = vadd.f32 0.0, %v891
    %893 = vdwg.mxu0
    %894 = vmatpush.msra.mxu0 0.0
    %895 = vmatpush.msra.mxu0 0.0
    %896 = vmatpush.msra.mxu0 0.0
    %897 = vmatpush.msra.mxu0 0.0
    %898 = vmatpush.msra.mxu0 0.0
    %899 = vmatpush.msra.mxu0 0.0
    %900 = vmatpush.msra.mxu0 0.0
    %901 = vmatpush.msra.mxu0 0.0
    %902 = vmatpush.msra.mxu0 0.0
    %903 = vmatpush.msra.mxu0 0.0
    %904 = vmatpush.msra.mxu0 0.0
    %905 = vmatpush.msra.mxu0 0.0
    %906 = vmatpush.msra.mxu0 0.0
    %907 = vmatpush.msra.mxu0 0.0
    %908 = vmatpush.msra.mxu0 0.0
    %909 = vmatpush.msra.mxu0 %v830
    %910 = vmatmul.f32.gmra.mxu0 %v366
    %v911 = vpop.f32.mrf.mxu0
    %v912 = vadd.f32 0.0, %v911
    %913 = vdwg.mxu0
    %v914 = vadd.f32 %v892, %v389
    %v915 = vadd.f32 %v912, %v389
    %v916 = vld [vmem:[#allocation16] sm:$0xff]
    %v917 = vld [vmem:[#allocation16 + $0x8] sm:$0xff]
    %v918 = vld [vmem:[#allocation16 + $0x10] sm:$0xff]
    %v919 = vld [vmem:[#allocation16 + $0x18] sm:$0xff]
    %v920 = vld [vmem:[#allocation17] sm:$0xff]
    %v921 = vld [vmem:[#allocation17 + $0x8] sm:$0xff]
    %v922 = vld [vmem:[#allocation17 + $0x10] sm:$0xff]
    %v923 = vld [vmem:[#allocation17 + $0x18] sm:$0xff]
    %v925 = vsel %vm234, %v914, 0
    %v928 = vsel %vm234, %v915, 0
    %930 = vmatpush.msra.mxu0 0.0
    %931 = vmatpush.msra.mxu0 0.0
    %932 = vmatpush.msra.mxu0 0.0
    %933 = vmatpush.msra.mxu0 0.0
    %934 = vmatpush.msra.mxu0 0.0
    %935 = vmatpush.msra.mxu0 0.0
    %936 = vmatpush.msra.mxu0 0.0
    %937 = vmatpush.msra.mxu0 0.0
    %938 = vmatpush.msra.mxu0 0.0
    %939 = vmatpush.msra.mxu0 0.0
    %940 = vmatpush.msra.mxu0 0.0
    %941 = vmatpush.msra.mxu0 0.0
    %942 = vmatpush.msra.mxu0 %v923
    %943 = vmatpush.msra.mxu0 %v922
    %944 = vmatpush.msra.mxu0 %v921
    %945 = vmatpush.msra.mxu0 %v920
    %946 = vmatmul.f32.gmra.mxu0 %v925
    %v947 = vpop.f32.mrf.mxu0
    %v948 = vadd.f32 0.0, %v947
    %949 = vmatmul.f32.gmra.mxu0 %v928
    %v950 = vpop.f32.mrf.mxu0
    %v951 = vadd.f32 0.0, %v950
    %952 = vdwg.mxu0
    %v954 = vsel %vm234, %v872, 0
    %v957 = vsel %vm234, %v873, 0
    %959 = vmatpush.msra.mxu0 0.0
    %960 = vmatpush.msra.mxu0 0.0
    %961 = vmatpush.msra.mxu0 0.0
    %962 = vmatpush.msra.mxu0 0.0
    %963 = vmatpush.msra.mxu0 0.0
    %964 = vmatpush.msra.mxu0 0.0
    %965 = vmatpush.msra.mxu0 0.0
    %966 = vmatpush.msra.mxu0 0.0
    %967 = vmatpush.msra.mxu0 0.0
    %968 = vmatpush.msra.mxu0 0.0
    %969 = vmatpush.msra.mxu0 0.0
    %970 = vmatpush.msra.mxu0 0.0
    %971 = vmatpush.msra.mxu0 %v919
    %972 = vmatpush.msra.mxu0 %v918
    %973 = vmatpush.msra.mxu0 %v917
    %974 = vmatpush.msra.mxu0 %v916
    %975 = vmatmul.f32.gmra.mxu0 %v954
    %v976 = vpop.f32.mrf.mxu0
    %v977 = vadd.f32 %v948, %v976
    %978 = vmatmul.f32.gmra.mxu0 %v957
    %v979 = vpop.f32.mrf.mxu0
    %v980 = vadd.f32 %v951, %v979
    %981 = vdwg.mxu0
    %v982 = vld [vmem:[%s11] sm:$0x1]
    %v984 = vperm.slane %v982, 0
    %v986 = vadd.f32 %v977, %v984
    %v987 = vadd.f32 %v980, %v984
    %v988 = vld [vmem:[#allocation19] sm:$0xff]
    %v989 = vld [vmem:[#allocation19 + $0x8] sm:$0xff]
    %v990 = vld [vmem:[#allocation19 + $0x10] sm:$0xff]
    %v991 = vld [vmem:[#allocation19 + $0x18] sm:$0xff]
    %v992 = vld [vmem:[%s13] sm:$0x1]
    %v994 = vperm.slane %v992, 0
    %996 = vmatpush.msra.mxu0 0.0
    %997 = vmatpush.msra.mxu0 0.0
    %998 = vmatpush.msra.mxu0 0.0
    %999 = vmatpush.msra.mxu0 0.0
    %1000 = vmatpush.msra.mxu0 0.0
    %1001 = vmatpush.msra.mxu0 0.0
    %1002 = vmatpush.msra.mxu0 0.0
    %1003 = vmatpush.msra.mxu0 0.0
    %1004 = vmatpush.msra.mxu0 0.0
    %1005 = vmatpush.msra.mxu0 0.0
    %1006 = vmatpush.msra.mxu0 0.0
    %1007 = vmatpush.msra.mxu0 0.0
    %1008 = vmatpush.msra.mxu0 %v991
    %1009 = vmatpush.msra.mxu0 %v990
    %1010 = vmatpush.msra.mxu0 %v989
    %1011 = vmatpush.msra.mxu0 %v988
    %1012 = vmatmul.f32.gmra.mxu0 %v781
    %v1013 = vpop.f32.mrf.mxu0
    %v1014 = vadd.f32 %v994, %v1013
    %1015 = vmatmul.f32.gmra.mxu0 %v784
    %v1016 = vpop.f32.mrf.mxu0
    %v1017 = vadd.f32 %v994, %v1016
    %1018 = vdwg.mxu0
    %v1019 = vld [vmem:[%s496] sm:$0xff]
    %v1020 = vld [vmem:[%s496 + $0x8] sm:$0xff]
    %v1021 = vld [vmem:[%s496 + $0x10] sm:$0xff]
    %v1022 = vld [vmem:[%s496 + $0x18] sm:$0xff]
    %v1023 = vld [vmem:[%s501] sm:$0xff]
    %v1024 = vld [vmem:[%s501 + $0x8] sm:$0xff]
    %v1025 = vld [vmem:[%s501 + $0x10] sm:$0xff]
    %v1026 = vld [vmem:[%s501 + $0x18] sm:$0xff]
    %1027 = vmatpush.msra.mxu0 0.0
    %1028 = vmatpush.msra.mxu0 0.0
    %1029 = vmatpush.msra.mxu0 0.0
    %1030 = vmatpush.msra.mxu0 0.0
    %1031 = vmatpush.msra.mxu0 0.0
    %1032 = vmatpush.msra.mxu0 0.0
    %1033 = vmatpush.msra.mxu0 0.0
    %1034 = vmatpush.msra.mxu0 0.0
    %1035 = vmatpush.msra.mxu0 0.0
    %1036 = vmatpush.msra.mxu0 0.0
    %1037 = vmatpush.msra.mxu0 0.0
    %1038 = vmatpush.msra.mxu0 0.0
    %1039 = vmatpush.msra.mxu0 %v1026
    %1040 = vmatpush.msra.mxu0 %v1025
    %1041 = vmatpush.msra.mxu0 %v1024
    %1042 = vmatpush.msra.mxu0 %v1023
    %1043 = vmatmul.f32.gmra.mxu0 %v925
    %v1044 = vpop.f32.mrf.mxu0
    %v1045 = vadd.f32 0.0, %v1044
    %1046 = vmatmul.f32.gmra.mxu0 %v928
    %v1047 = vpop.f32.mrf.mxu0
    %v1048 = vadd.f32 0.0, %v1047
    %1049 = vdwg.mxu0
    %1050 = vmatpush.msra.mxu0 0.0
    %1051 = vmatpush.msra.mxu0 0.0
    %1052 = vmatpush.msra.mxu0 0.0
    %1053 = vmatpush.msra.mxu0 0.0
    %1054 = vmatpush.msra.mxu0 0.0
    %1055 = vmatpush.msra.mxu0 0.0
    %1056 = vmatpush.msra.mxu0 0.0
    %1057 = vmatpush.msra.mxu0 0.0
    %1058 = vmatpush.msra.mxu0 0.0
    %1059 = vmatpush.msra.mxu0 0.0
    %1060 = vmatpush.msra.mxu0 0.0
    %1061 = vmatpush.msra.mxu0 0.0
    %1062 = vmatpush.msra.mxu0 %v1022
    %1063 = vmatpush.msra.mxu0 %v1021
    %1064 = vmatpush.msra.mxu0 %v1020
    %1065 = vmatpush.msra.mxu0 %v1019
    %1066 = vmatmul.f32.gmra.mxu0 %v954
    %v1067 = vpop.f32.mrf.mxu0
    %v1068 = vadd.f32 %v1045, %v1067
    %1069 = vmatmul.f32.gmra.mxu0 %v957
    %v1070 = vpop.f32.mrf.mxu0
    %v1071 = vadd.f32 %v1048, %v1070
    %1072 = vdwg.mxu0
    %v1073 = vld [vmem:[%s552] sm:$0x1]
    %v1075 = vperm.slane %v1073, 0
    %v1077 = vadd.f32 %v1068, %v1075
    %v1078 = vadd.f32 %v1071, %v1075
    %v1079 = vld [vmem:[%s559] sm:$0xff]
    %v1080 = vld [vmem:[%s559 + $0x8] sm:$0xff]
    %v1081 = vld [vmem:[%s559 + $0x10] sm:$0xff]
    %v1082 = vld [vmem:[%s559 + $0x18] sm:$0xff]
    %v1083 = vld [vmem:[%s564] sm:$0x1]
    %v1085 = vperm.slane %v1083, 0
    %1087 = vmatpush.msra.mxu0 0.0
    %1088 = vmatpush.msra.mxu0 0.0
    %1089 = vmatpush.msra.mxu0 0.0
    %1090 = vmatpush.msra.mxu0 0.0
    %1091 = vmatpush.msra.mxu0 0.0
    %1092 = vmatpush.msra.mxu0 0.0
    %1093 = vmatpush.msra.mxu0 0.0
    %1094 = vmatpush.msra.mxu0 0.0
    %1095 = vmatpush.msra.mxu0 0.0
    %1096 = vmatpush.msra.mxu0 0.0
    %1097 = vmatpush.msra.mxu0 0.0
    %1098 = vmatpush.msra.mxu0 0.0
    %1099 = vmatpush.msra.mxu0 %v1082
    %1100 = vmatpush.msra.mxu0 %v1081
    %1101 = vmatpush.msra.mxu0 %v1080
    %1102 = vmatpush.msra.mxu0 %v1079
    %1103 = vmatmul.f32.gmra.mxu0 %v781
    %v1104 = vpop.f32.mrf.mxu0
    %v1105 = vadd.f32 %v1085, %v1104
    %1106 = vmatmul.f32.gmra.mxu0 %v784
    %v1107 = vpop.f32.mrf.mxu0
    %v1108 = vadd.f32 %v1085, %v1107
    %1109 = vdwg.mxu0
    %v1110 = vld [vmem:[%s592] sm:$0xff]
    %v1111 = vld [vmem:[%s592 + $0x8] sm:$0xff]
    %v1112 = vld [vmem:[%s592 + $0x10] sm:$0xff]
    %v1113 = vld [vmem:[%s592 + $0x18] sm:$0xff]
    %v1114 = vld [vmem:[%s597] sm:$0xff]
    %v1115 = vld [vmem:[%s597 + $0x8] sm:$0xff]
    %v1116 = vld [vmem:[%s597 + $0x10] sm:$0xff]
    %v1117 = vld [vmem:[%s597 + $0x18] sm:$0xff]
    %1118 = vmatpush.msra.mxu0 0.0
    %1119 = vmatpush.msra.mxu0 0.0
    %1120 = vmatpush.msra.mxu0 0.0
    %1121 = vmatpush.msra.mxu0 0.0
    %1122 = vmatpush.msra.mxu0 0.0
    %1123 = vmatpush.msra.mxu0 0.0
    %1124 = vmatpush.msra.mxu0 0.0
    %1125 = vmatpush.msra.mxu0 0.0
    %1126 = vmatpush.msra.mxu0 0.0
    %1127 = vmatpush.msra.mxu0 0.0
    %1128 = vmatpush.msra.mxu0 0.0
    %1129 = vmatpush.msra.mxu0 0.0
    %1130 = vmatpush.msra.mxu0 %v1117
    %1131 = vmatpush.msra.mxu0 %v1116
    %1132 = vmatpush.msra.mxu0 %v1115
    %1133 = vmatpush.msra.mxu0 %v1114
    %1134 = vmatmul.f32.gmra.mxu0 %v925
    %v1135 = vpop.f32.mrf.mxu0
    %v1136 = vadd.f32 0.0, %v1135
    %1137 = vmatmul.f32.gmra.mxu0 %v928
    %v1138 = vpop.f32.mrf.mxu0
    %v1139 = vadd.f32 0.0, %v1138
    %1140 = vdwg.mxu0
    %1141 = vmatpush.msra.mxu0 0.0
    %1142 = vmatpush.msra.mxu0 0.0
    %1143 = vmatpush.msra.mxu0 0.0
    %1144 = vmatpush.msra.mxu0 0.0
    %1145 = vmatpush.msra.mxu0 0.0
    %1146 = vmatpush.msra.mxu0 0.0
    %1147 = vmatpush.msra.mxu0 0.0
    %1148 = vmatpush.msra.mxu0 0.0
    %1149 = vmatpush.msra.mxu0 0.0
    %1150 = vmatpush.msra.mxu0 0.0
    %1151 = vmatpush.msra.mxu0 0.0
    %1152 = vmatpush.msra.mxu0 0.0
    %1153 = vmatpush.msra.mxu0 %v1113
    %1154 = vmatpush.msra.mxu0 %v1112
    %1155 = vmatpush.msra.mxu0 %v1111
    %1156 = vmatpush.msra.mxu0 %v1110
    %1157 = vmatmul.f32.gmra.mxu0 %v954
    %v1158 = vpop.f32.mrf.mxu0
    %v1159 = vadd.f32 %v1136, %v1158
    %1160 = vmatmul.f32.gmra.mxu0 %v957
    %v1161 = vpop.f32.mrf.mxu0
    %v1162 = vadd.f32 %v1139, %v1161
    %1163 = vdwg.mxu0
    %v1164 = vld [vmem:[%s648] sm:$0x1]
    %v1166 = vperm.slane %v1164, 0
    %v1168 = vadd.f32 %v1159, %v1166
    %v1169 = vadd.f32 %v1162, %v1166
    %v1170 = vld [vmem:[%s655] sm:$0xff]
    %v1171 = vld [vmem:[%s655 + $0x8] sm:$0xff]
    %v1172 = vld [vmem:[%s655 + $0x10] sm:$0xff]
    %v1173 = vld [vmem:[%s655 + $0x18] sm:$0xff]
    %v1174 = vld [vmem:[%s660] sm:$0x1]
    %v1176 = vperm.slane %v1174, 0
    %1178 = vmatpush.msra.mxu0 0.0
    %1179 = vmatpush.msra.mxu0 0.0
    %1180 = vmatpush.msra.mxu0 0.0
    %1181 = vmatpush.msra.mxu0 0.0
    %1182 = vmatpush.msra.mxu0 0.0
    %1183 = vmatpush.msra.mxu0 0.0
    %1184 = vmatpush.msra.mxu0 0.0
    %1185 = vmatpush.msra.mxu0 0.0
    %1186 = vmatpush.msra.mxu0 0.0
    %1187 = vmatpush.msra.mxu0 0.0
    %1188 = vmatpush.msra.mxu0 0.0
    %1189 = vmatpush.msra.mxu0 0.0
    %1190 = vmatpush.msra.mxu0 %v1173
    %1191 = vmatpush.msra.mxu0 %v1172
    %1192 = vmatpush.msra.mxu0 %v1171
    %1193 = vmatpush.msra.mxu0 %v1170
    %1194 = vmatmul.f32.gmra.mxu0 %v781
    %v1195 = vpop.f32.mrf.mxu0
    %v1196 = vadd.f32 %v1176, %v1195
    %1197 = vmatmul.f32.gmra.mxu0 %v784
    %v1198 = vpop.f32.mrf.mxu0
    %v1199 = vadd.f32 %v1176, %v1198
    %1200 = vdwg.mxu0
    %v1201 = vadd.f32 %v986, %v1014
    %v1202 = vadd.f32 %v987, %v1017
    %v1203 = vxor.u32 %v1201, 2147483648
    %v1204 = vxor.u32 %v1202, 2147483648
    %v1205 = vmul.f32 %v1203, 1.442695
    %v1206 = vpow.pop %v1205
    %v1207 = vmul.f32 %v1204, 1.442695
    %v1208 = vpow.pop %v1207
    %v1209 = vadd.f32 %v1206, 1.0
    %v1210 = vadd.f32 %v1208, 1.0
    %v1211 = vrcp.pop %v1209
    %v1212 = vmul.f32 %v1209, %v1211
    %v1213 = vsub.f32 1.0, %v1212
    %v1214 = vmul.f32 %v1211, %v1213
    %v1215 = vadd.f32 %v1211, %v1214
    %vm1216 = vweird.f32 %v1209
    %vm1217 = vweird.f32 %v1211
    %vm1218 = vmor %vm1216, %vm1217
    %v1219 = vsel %vm1218, %v1211, %v1215
    %v1220 = vand.u32 2147483647, %v1209
    %vm1221 = vcmp.eq.f32.partialorder %v1220, 8.507059e+37
    %v1222 = vand.u32 %v1209, 2147483648
    %v1223 = vor.u32 1.1754944e-38, %v1222
    %v1224 = vsel %vm1221, %v1223, %v1219
    %v1225 = vmul.f32 1.0, %v1224
    %v1226 = vrcp.pop %v1210
    %v1227 = vmul.f32 %v1210, %v1226
    %v1228 = vsub.f32 1.0, %v1227
    %v1229 = vmul.f32 %v1226, %v1228
    %v1230 = vadd.f32 %v1226, %v1229
    %vm1231 = vweird.f32 %v1210
    %vm1232 = vweird.f32 %v1226
    %vm1233 = vmor %vm1231, %vm1232
    %v1234 = vsel %vm1233, %v1226, %v1230
    %v1235 = vand.u32 2147483647, %v1210
    %vm1236 = vcmp.eq.f32.partialorder %v1235, 8.507059e+37
    %v1237 = vand.u32 %v1210, 2147483648
    %v1238 = vor.u32 1.1754944e-38, %v1237
    %v1239 = vsel %vm1236, %v1238, %v1234
    %v1240 = vmul.f32 1.0, %v1239
    %v1241 = vadd.f32 %v1077, %v1105
    %v1242 = vadd.f32 %v1078, %v1108
    %v1243 = vxor.u32 %v1241, 2147483648
    %v1244 = vxor.u32 %v1242, 2147483648
    %v1245 = vmul.f32 %v1243, 1.442695
    %v1246 = vpow.pop %v1245
    %v1247 = vmul.f32 %v1244, 1.442695
    %v1248 = vpow.pop %v1247
    %v1249 = vadd.f32 %v1246, 1.0
    %v1250 = vadd.f32 %v1248, 1.0
    %v1251 = vrcp.pop %v1249
    %v1252 = vmul.f32 %v1249, %v1251
    %v1253 = vsub.f32 1.0, %v1252
    %v1254 = vmul.f32 %v1251, %v1253
    %v1255 = vadd.f32 %v1251, %v1254
    %vm1256 = vweird.f32 %v1249
    %vm1257 = vweird.f32 %v1251
    %vm1258 = vmor %vm1256, %vm1257
    %v1259 = vsel %vm1258, %v1251, %v1255
    %v1260 = vand.u32 2147483647, %v1249
    %vm1261 = vcmp.eq.f32.partialorder %v1260, 8.507059e+37
    %v1262 = vand.u32 %v1249, 2147483648
    %v1263 = vor.u32 1.1754944e-38, %v1262
    %v1264 = vsel %vm1261, %v1263, %v1259
    %v1265 = vmul.f32 1.0, %v1264
    %v1266 = vrcp.pop %v1250
    %v1267 = vmul.f32 %v1250, %v1266
    %v1268 = vsub.f32 1.0, %v1267
    %v1269 = vmul.f32 %v1266, %v1268
    %v1270 = vadd.f32 %v1266, %v1269
    %vm1271 = vweird.f32 %v1250
    %vm1272 = vweird.f32 %v1266
    %vm1273 = vmor %vm1271, %vm1272
    %v1274 = vsel %vm1273, %v1266, %v1270
    %v1275 = vand.u32 2147483647, %v1250
    %vm1276 = vcmp.eq.f32.partialorder %v1275, 8.507059e+37
    %v1277 = vand.u32 %v1250, 2147483648
    %v1278 = vor.u32 1.1754944e-38, %v1277
    %v1279 = vsel %vm1276, %v1278, %v1274
    %v1280 = vmul.f32 1.0, %v1279
    %v1281 = vmul.f32 %v1225, %v1196
    %v1282 = vmul.f32 %v1240, %v1199
    %v1283 = vadd.f32 %v1168, %v1281
    %v1284 = vadd.f32 %v1169, %v1282
    %v1285 = vtanh.pop %v1283
    %v1286 = vtanh.pop %v1284
    %v1287 = vsub.f32 %v778, %v1285
    %v1288 = vsub.f32 %v779, %v1286
    %v1289 = vmul.f32 %v1265, %v1287
    %v1290 = vmul.f32 %v1280, %v1288
    %v1291 = vadd.f32 %v1285, %v1289
    %v1292 = vadd.f32 %v1286, %v1290
    %1293 = vst.msk [vmem:[#allocation20] sm:$0xff] %vm234, %v1291
    %1294 = vst.msk [vmem:[#allocation20 + $0x8] sm:$0xff] %vm234, %v1292
    // Predicated region
    $region102: #{tpu_custom_call.1} parent=1 // pred_check
      _
    $region103: #{tpu_custom_call.1} parent=1 // pred_check_branch
      %1296 = sbr.rel (0) target = $region105
    $region104: #{tpu_custom_call.1} parent=1 // pred_region
      %1298 = vsyncadd [#allocation4], 0
      %s1299 = sshll.u32 [#allocation20], 4
      %s1300 = int_to_ptr.vmem [resolvable:$true] %s1299
      %s1301 = sshll.u32 %s14, 4
      %s1302 = int_to_ptr.hbm [resolvable:$true] %s1301
      %1307 = dma.vmem_to_hbm [thread:$0]  %s1300, 256, %s1302, [#allocation4], 128, 128, 8
    $region105: #{tpu_custom_call.1} parent=1 // pred_fallthru
      _
    // Predicated region
    $region106: #{tpu_custom_call.1} parent=1 // pred_check
      _
    $region107: #{tpu_custom_call.1} parent=1 // pred_check_branch
      %1309 = sbr.rel (0) target = $region109
    $region108: #{tpu_custom_call.1} parent=1 // pred_region
      %1311 = dma.done [#allocation4], 256
    $region109: #{tpu_custom_call.1} parent=1 // pred_fallthru
      _
    %1312 = vsyncpa [#allocation3], 1
    %1313 = vsyncpa [#allocation6], 1
    %1314 = vsyncpa [#allocation9], 1
    %1315 = vsyncpa [#allocation12], 1
    %1316 = vsyncpa [#allocation15], 1
    %1317 = vsyncpa [#allocation18], 1
    %1318 = vsyncpa [#allocation4], 1

</llo_original>
